<compile_context>
chip_gen: v7x
topology: tpu7x:2x2x1
jax: 0.10.0
libtpu: 0.0.40
codegen_flags: <defaults>
</compile_context>

<pallas_src>
import functools

import jax
import jax.numpy as jnp
from jax.experimental import pallas as pl
from jax.experimental.pallas import tpu as pltpu

_VMEM = pl.BlockSpec(memory_space=pltpu.MemorySpace.VMEM)


# ----------------------------------------------------------------------------
# Fully fused MoNet forward kernel: L x (pseudo proj + gaussian weights +
# fc(before gather) + index gather + kernel-weighted sum + index scatter-add +
# graph norm + batch norm + ReLU + residual)  ->  mean readout  ->  MLPReadout.
# ----------------------------------------------------------------------------
def _monet_fused_kernel(src_ref, dst_ref,                       # SMEM (E,) i32
                        h_ref, pseudo_ref, snorm_ref, member_ref,
                        wp_ref, bp_ref, muT_ref, nhisT_ref, fcw_ref,
                        gamma_ref, beta_ref,
                        w1_ref, b1_ref, w2_ref, b2_ref, w3_ref, b3_ref,
                        out_ref,
                        hw_scr, wgt_scr, acc_scr,
                        *, residual, mxu_dtype):
    n_layers, pdim, n_kernels = nhisT_ref.shape                 # (L, D, K)
    out_dim = gamma_ref.shape[-1]
    n_edges = pseudo_ref.shape[0]

    h = h_ref[...]                                              # (N, H) f32, resident
    ps = pseudo_ref[...]                                        # (E, 2)
    snorm = snorm_ref[...]                                      # (N, 1)

    for l in range(n_layers):                                   # static L: unrolled
        h_in = h

        # pseudo_proj: tanh(Linear(2 -> D)) via VPU broadcast FMAs (no MXU).
        wp = wp_ref[l]                                          # (2, D)
        p = jnp.tanh(ps[:, 0:1] * wp[0:1, :] + ps[:, 1:2] * wp[1:2, :]
                     + bp_ref[l])                               # (E, D)

        # All K gaussian weights at once. nhisT = -0.5 * inv_sigma**2 (D, K).
        muT = muT_ref[l]                                        # (D, K)
        nhisT = nhisT_ref[l]                                    # (D, K)
        g = jnp.zeros((n_edges, n_kernels), jnp.float32)
        for d in range(pdim):                                   # D == 2, tiny static
            dif = p[:, d:d + 1] - muT[d:d + 1, :]               # (E, K)
            g = g + dif * dif * nhisT[d:d + 1, :]
        wgt_scr[...] = jnp.exp(g)                               # (E, K) -> VMEM scratch

        # fc BEFORE the gather: one dense MXU matmul per layer, scales with N.
        # Operands optionally bf16, accumulation f32.
        hw_scr[...] = jnp.dot(h.astype(mxu_dtype), fcw_ref[l],
                              preferred_element_type=jnp.float32)   # (N, K*O)

        # Index-based gather + kernel-weighted sum + scatter-add (exact, no
        # one-hot matmuls, no O(E*N) buffers). Serial edge loop is fine at this
        # size; at scale this becomes the edge-tiled pipelined stage.
        acc_scr[...] = jnp.zeros_like(acc_scr)

        @pl.loop(0, n_edges)
        def _(e):
            s_i = src_ref[e]                                    # SMEM scalar reads
            d_i = dst_ref[e]
            z = hw_scr[pl.ds(s_i, 1), :]                        # (1, K*O) row gather
            w = wgt_scr[pl.ds(e, 1), :]                         # (1, K)
            msg = z[:, 0:out_dim] * w[:, 0:1]
            for k in range(1, n_kernels):
                msg = msg + z[:, k * out_dim:(k + 1) * out_dim] * w[:, k:k + 1]
            acc_scr[pl.ds(d_i, 1), :] = acc_scr[pl.ds(d_i, 1), :] + msg

        hh = acc_scr[...] * snorm                               # graph-size norm
        # batch norm (training-mode batch stats, biased var, eps=1e-5), single pass
        mean = jnp.mean(hh, axis=0, keepdims=True)
        var = jnp.mean(hh * hh, axis=0, keepdims=True) - mean * mean
        hh = (hh - mean) * jax.lax.rsqrt(var + 1e-5) * gamma_ref[l] + beta_ref[l]
        hh = jnp.maximum(hh, 0.0)                               # ReLU
        if residual:
            hh = hh + h_in                                      # residual
        # dropout p=0.0 -> identity
        h = hh

    # mean_nodes readout (1/|V_g| folded into member host-side) + MLPReadout.
    hg = jnp.dot(member_ref[...], h.astype(mxu_dtype),
                 preferred_element_type=jnp.float32)            # (G, O)
    y = jnp.maximum(jnp.dot(hg.astype(mxu_dtype), w1_ref[...],
                            preferred_element_type=jnp.float32) + b1_ref[...], 0.0)
    y = jnp.maximum(jnp.dot(y.astype(mxu_dtype), w2_ref[...],
                            preferred_element_type=jnp.float32) + b2_ref[...], 0.0)
    out_ref[...] = jnp.dot(y.astype(mxu_dtype), w3_ref[...],
                           preferred_element_type=jnp.float32) + b3_ref[...]


def monet_forward(src_idx, dst_idx, h0, pseudo, snorm_n, member_scaled,
                  stacked, mlp, *, residual=True, mxu_dtype=jnp.float32):
    n_nodes, hidden = h0.shape
    n_edges = pseudo.shape[0]
    n_graphs = member_scaled.shape[0]
    n_layers, _, ko = stacked["fcw"].shape
    out_dim = stacked["gamma"].shape[-1]
    n_kernels = ko // out_dim
    pdim = stacked["wp"].shape[-1]
    d1, d2 = mlp["w1"].shape[1], mlp["w2"].shape[1]

    # MXU operands (weights / readout membership) pre-cast host-side; activations
    # are cast right at each dot inside the kernel.  Biases / BN params / all
    # element-wise math stay f32 (v5e has no bf16 VPU/EUP).
    fcw = stacked["fcw"].astype(mxu_dtype)
    member = member_scaled.astype(mxu_dtype)
    w1, w2, w3 = (mlp["w1"].astype(mxu_dtype), mlp["w2"].astype(mxu_dtype),
                  mlp["w3"].astype(mxu_dtype))

    tensor_inputs = (h0, pseudo, snorm_n, member,
                     stacked["wp"], stacked["bp"], stacked["muT"], stacked["nhisT"],
                     fcw, stacked["gamma"], stacked["beta"],
                     w1, mlp["b1"], w2, mlp["b2"], w3, mlp["b3"])

    flops = n_layers * (2 * n_nodes * hidden * ko                 # fc (per layer)
                        + n_edges * (4 * pdim + 3 * pdim * n_kernels)  # pseudo+gauss
                        + n_edges * (2 * ko + out_dim)            # weighting+scatter
                        + 10 * n_nodes * out_dim)                 # norm/relu/residual
    flops += 2 * n_graphs * n_nodes * out_dim                     # mean readout
    flops += 2 * n_graphs * (out_dim * d1 + d1 * d2 + d2)         # MLPReadout
    transcendentals = n_layers * (n_edges * (pdim + n_kernels) + out_dim)
    bytes_accessed = (sum(int(a.size) * a.dtype.itemsize for a in tensor_inputs)
                      + 2 * n_edges * 4          # src/dst indices
                      + n_graphs * 4)            # output

    grid_spec = pltpu.PrefetchScalarGridSpec(
        num_scalar_prefetch=2,                   # src_idx, dst_idx -> SMEM
        grid=(1,),
        in_specs=[_VMEM] * len(tensor_inputs),
        out_specs=_VMEM,
        scratch_shapes=[
            pltpu.VMEM((n_nodes, ko), jnp.float32),            # hw = h @ fcw[l]
            pltpu.VMEM((n_edges, n_kernels), jnp.float32),     # gaussian weights
            pltpu.VMEM((n_nodes, out_dim), jnp.float32),       # scatter accumulator
        ],
    )

    kern = functools.partial(_monet_fused_kernel, residual=residual,
                             mxu_dtype=mxu_dtype)
    return pl.pallas_call(
        kern,
        out_shape=jax.ShapeDtypeStruct((n_graphs, 1), jnp.float32),
        grid_spec=grid_spec,
        compiler_params=pltpu.CompilerParams(
            dimension_semantics=("arbitrary",),
            vmem_limit_bytes=32 * 1024 * 1024,   # explicit scoped-VMEM headroom
        ),
        cost_estimate=pl.CostEstimate(flops=flops,
                                      transcendentals=transcendentals,
                                      bytes_accessed=bytes_accessed),
    )(src_idx, dst_idx, *tensor_inputs)


# ----------------------------------------------------------------------------
# Pure-JAX reference (same math, segment ops) used as a correctness check.
# ----------------------------------------------------------------------------
def ref_forward(h0, pseudo, src, dst, snorm_n, graph_id, n_graphs,
                layer_params, mlp, *, residual=True):
    h = h0
    for lp in layer_params:
        h_in = h
        p = jnp.tanh(pseudo @ lp["wp"] + lp["bp"])
        n_k, _, out_dim = lp["fc_w"].shape
        acc = jnp.zeros((h.shape[0], out_dim), jnp.float32)
        for k in range(n_k):
            diff = p - lp["mu"][k]
            w_k = jnp.exp(jnp.sum(-0.5 * diff * diff * lp["inv_sigma"][k] ** 2,
                                  axis=-1, keepdims=True))
            h_k = h @ lp["fc_w"][k]
            acc = acc.at[dst].add(h_k[src] * w_k)
        hh = acc * snorm_n
        mean = hh.mean(0, keepdims=True)
        var = ((hh - mean) ** 2).mean(0, keepdims=True)
        hh = (hh - mean) / jnp.sqrt(var + 1e-5) * lp["bn_gamma"] + lp["bn_beta"]
        hh = jnp.maximum(hh, 0.0)
        h = hh + h_in if residual else hh
    member = jax.nn.one_hot(graph_id, n_graphs, dtype=jnp.float32).T
    counts = member.sum(1, keepdims=True)
    hg = (member @ h) / counts
    y = jnp.maximum(hg @ mlp["w1"] + mlp["b1"], 0.0)
    y = jnp.maximum(y @ mlp["w2"] + mlp["b2"], 0.0)
    return y @ mlp["w3"] + mlp["b3"]


if __name__ == "__main__":
    # ---------------- synthetic batched graph: 2 graphs (9 + 7 nodes) --------
    sizes = [9, 7]
    src_list, dst_list, gid_list = [], [], []
    offset = 0
    for g_i, n in enumerate(sizes):
        for i in range(n):                      # bidirectional ring per graph
            u, v = offset + i, offset + (i + 1) % n
            src_list += [u, v]
            dst_list += [v, u]
        gid_list += [g_i] * n
        offset += n
    N, E, G = sum(sizes), len(src_list), len(sizes)

    src = jnp.array(src_list, jnp.int32)
    dst = jnp.array(dst_list, jnp.int32)
    graph_id = jnp.array(gid_list, jnp.int32)

    # ---------------- hyper-parameters ---------------------------------------
    num_atom_type, hidden_dim, out_dim = 7, 32, 32
    K, D, L = 3, 2, 3

    # ---------------- deterministic parameter init ---------------------------
    keys = iter(jax.random.split(jax.random.PRNGKey(0), 4 * L + 10))
    emb_table = 0.5 * jax.random.normal(next(keys), (num_atom_type, hidden_dim),
                                        jnp.float32)
    node_types = jax.random.randint(next(keys), (N,), 0, num_atom_type)

    layer_params = []
    for _ in range(L):
        layer_params.append(dict(
            wp=jax.random.normal(next(keys), (2, D), jnp.float32) / jnp.sqrt(2.0),
            bp=0.1 * jax.random.normal(next(keys), (1, D), jnp.float32),
            mu=0.1 * jax.random.normal(next(keys), (K, D), jnp.float32),
            inv_sigma=jnp.ones((K, D), jnp.float32),
            # fc weight stored pre-stacked as (K, H_in, O)
            fc_w=jax.random.normal(next(keys), (K, hidden_dim, out_dim),
                                   jnp.float32) * jnp.sqrt(2.0 / (hidden_dim + K * out_dim)),
            bn_gamma=jnp.ones((1, out_dim), jnp.float32),
            bn_beta=jnp.zeros((1, out_dim), jnp.float32),
        ))

    d1, d2 = out_dim // 2, out_dim // 4          # MLPReadout: 32 -> 16 -> 8 -> 1
    mlp = dict(
        w1=jax.random.normal(next(keys), (out_dim, d1), jnp.float32) / jnp.sqrt(out_dim),
        b1=jnp.zeros((1, d1), jnp.float32),
        w2=jax.random.normal(next(keys), (d1, d2), jnp.float32) / jnp.sqrt(d1),
        b2=jnp.zeros((1, d2), jnp.float32),
        w3=jax.random.normal(next(keys), (d2, 1), jnp.float32) / jnp.sqrt(d2),
        b3=jnp.zeros((1, 1), jnp.float32),
    )

    # ---------------- JAX glue: embedding, pseudo coords, per-node scales ----
    h0 = jnp.take(emb_table, node_types, axis=0)                       # (N, H)

    in_deg = jnp.zeros((N,), jnp.float32).at[dst].add(1.0)             # in-degrees
    pseudo = jnp.stack([1.0 / jnp.sqrt(in_deg[src] + 1.0),
                        1.0 / jnp.sqrt(in_deg[dst] + 1.0)], axis=1)    # (E, 2)

    counts = jnp.zeros((G,), jnp.float32).at[graph_id].add(1.0)
    snorm_n = (1.0 / jnp.sqrt(counts[graph_id]))[:, None]              # (N, 1)

    # mean-nodes readout membership with 1/|V_g| folded in host-side (review).
    member_scaled = jax.nn.one_hot(graph_id, G, dtype=jnp.float32).T / counts[:, None]

    # ---------------- layer params stacked along L for the fused kernel ------
    stacked = dict(
        wp=jnp.stack([lp["wp"] for lp in layer_params]),               # (L, 2, D)
        bp=jnp.stack([lp["bp"] for lp in layer_params]),               # (L, 1, D)
        muT=jnp.stack([lp["mu"].T for lp in layer_params]),            # (L, D, K)
        nhisT=jnp.stack([(-0.5 * lp["inv_sigma"] ** 2).T
                         for lp in layer_params]),                     # (L, D, K)
        fcw=jnp.stack([jnp.transpose(lp["fc_w"], (1, 0, 2))
                       .reshape(hidden_dim, K * out_dim)
                       for lp in layer_params]),                       # (L, H, K*O)
        gamma=jnp.stack([lp["bn_gamma"] for lp in layer_params]),      # (L, 1, O)
        beta=jnp.stack([lp["bn_beta"] for lp in layer_params]),        # (L, 1, O)
    )

    # ---------------- reference ----------------------------------------------
    ref = ref_forward(h0, pseudo, src, dst, snorm_n, graph_id, G,
                      layer_params, mlp, residual=True)

    # ---- f32 MXU operands: exact module semantics, tight correctness check --
    scores_f32 = monet_forward(src, dst, h0, pseudo, snorm_n, member_scaled,
                               stacked, mlp, residual=True,
                               mxu_dtype=jnp.float32)                  # (G, 1)
    scores_f32 = jax.block_until_ready(scores_f32)
    assert scores_f32.shape == (G, 1)
    assert jnp.allclose(scores_f32, ref, atol=1e-3, rtol=1e-3), (scores_f32, ref)

    # ---- bf16 MXU operands + f32 accumulation (review item): only the dot
    # ---- operands are rounded, gather/scatter and element-wise math stay f32;
    # ---- checked at a loose tolerance that covers bf16 operand rounding.
    scores_bf16 = monet_forward(src, dst, h0, pseudo, snorm_n, member_scaled,
                                stacked, mlp, residual=True,
                                mxu_dtype=jnp.bfloat16)
    scores_bf16 = jax.block_until_ready(scores_bf16)
    assert jnp.allclose(scores_bf16, ref, atol=1e-1, rtol=1e-1), (scores_bf16, ref)

    print("KERNEL_OK")
</pallas_src>

<mosaic_0001>
module attributes {stable_mosaic.version = 11 : i64} {
  func.func @_monet_fused_kernel(%arg0: i32, %arg1: memref<32xi32, #tpu.memory_space<smem>>, %arg2: memref<32xi32, #tpu.memory_space<smem>>, %arg3: memref<16x32xf32, #tpu.memory_space<vmem>>, %arg4: memref<32x2xf32, #tpu.memory_space<vmem>>, %arg5: memref<16x1xf32, #tpu.memory_space<vmem>>, %arg6: memref<2x16xf32, #tpu.memory_space<vmem>>, %arg7: memref<3x2x2xf32, #tpu.memory_space<vmem>>, %arg8: memref<3x1x2xf32, #tpu.memory_space<vmem>>, %arg9: memref<3x2x3xf32, #tpu.memory_space<vmem>>, %arg10: memref<3x2x3xf32, #tpu.memory_space<vmem>>, %arg11: memref<3x32x96xf32, #tpu.memory_space<vmem>>, %arg12: memref<3x1x32xf32, #tpu.memory_space<vmem>>, %arg13: memref<3x1x32xf32, #tpu.memory_space<vmem>>, %arg14: memref<32x16xf32, #tpu.memory_space<vmem>>, %arg15: memref<1x16xf32, #tpu.memory_space<vmem>>, %arg16: memref<16x8xf32, #tpu.memory_space<vmem>>, %arg17: memref<1x8xf32, #tpu.memory_space<vmem>>, %arg18: memref<8x1xf32, #tpu.memory_space<vmem>>, %arg19: memref<1x1xf32, #tpu.memory_space<vmem>>, %arg20: memref<2x1xf32, #tpu.memory_space<vmem>>, %arg21: memref<16x96xf32, #tpu.memory_space<vmem>>, %arg22: memref<32x3xf32, #tpu.memory_space<vmem>>, %arg23: memref<16x32xf32, #tpu.memory_space<vmem>>) attributes {dimension_semantics = [#tpu.dimension_semantics<arbitrary>], iteration_bounds = array<i64: 1>, scalar_prefetch = 2 : i64, scratch_operands = 3 : i64, tpu.core_type = #tpu.core_type<tc>, window_params = [{pipeline_mode = #tpu.pipeline_mode<synchronous>, transform_indices = @transform_0, window_bounds = array<i64: 16, 32>}, {pipeline_mode = #tpu.pipeline_mode<synchronous>, transform_indices = @transform_1, window_bounds = array<i64: 32, 2>}, {pipeline_mode = #tpu.pipeline_mode<synchronous>, transform_indices = @transform_2, window_bounds = array<i64: 16, 1>}, {pipeline_mode = #tpu.pipeline_mode<synchronous>, transform_indices = @transform_3, window_bounds = array<i64: 2, 16>}, {pipeline_mode = #tpu.pipeline_mode<synchronous>, transform_indices = @transform_4, window_bounds = array<i64: 3, 2, 2>}, {pipeline_mode = #tpu.pipeline_mode<synchronous>, transform_indices = @transform_5, window_bounds = array<i64: 3, 1, 2>}, {pipeline_mode = #tpu.pipeline_mode<synchronous>, transform_indices = @transform_6, window_bounds = array<i64: 3, 2, 3>}, {pipeline_mode = #tpu.pipeline_mode<synchronous>, transform_indices = @transform_7, window_bounds = array<i64: 3, 2, 3>}, {pipeline_mode = #tpu.pipeline_mode<synchronous>, transform_indices = @transform_8, window_bounds = array<i64: 3, 32, 96>}, {pipeline_mode = #tpu.pipeline_mode<synchronous>, transform_indices = @transform_9, window_bounds = array<i64: 3, 1, 32>}, {pipeline_mode = #tpu.pipeline_mode<synchronous>, transform_indices = @transform_10, window_bounds = array<i64: 3, 1, 32>}, {pipeline_mode = #tpu.pipeline_mode<synchronous>, transform_indices = @transform_11, window_bounds = array<i64: 32, 16>}, {pipeline_mode = #tpu.pipeline_mode<synchronous>, transform_indices = @transform_12, window_bounds = array<i64: 1, 16>}, {pipeline_mode = #tpu.pipeline_mode<synchronous>, transform_indices = @transform_13, window_bounds = array<i64: 16, 8>}, {pipeline_mode = #tpu.pipeline_mode<synchronous>, transform_indices = @transform_14, window_bounds = array<i64: 1, 8>}, {pipeline_mode = #tpu.pipeline_mode<synchronous>, transform_indices = @transform_15, window_bounds = array<i64: 8, 1>}, {pipeline_mode = #tpu.pipeline_mode<synchronous>, transform_indices = @transform_16, window_bounds = array<i64: 1, 1>}, {pipeline_mode = #tpu.pipeline_mode<synchronous>, transform_indices = @transform_17, window_bounds = array<i64: 2, 1>}]} {
    %c0 = arith.constant 0 : index
    %c0_0 = arith.constant 0 : index
    %0 = vector.load %arg3[%c0, %c0_0] : memref<16x32xf32, #tpu.memory_space<vmem>>, vector<16x32xf32>
    %c0_1 = arith.constant 0 : index
    %c0_2 = arith.constant 0 : index
    %1 = vector.load %arg4[%c0_1, %c0_2] : memref<32x2xf32, #tpu.memory_space<vmem>>, vector<32x2xf32>
    %c0_3 = arith.constant 0 : index
    %c0_4 = arith.constant 0 : index
    %2 = vector.load %arg5[%c0_3, %c0_4] : memref<16x1xf32, #tpu.memory_space<vmem>>, vector<16x1xf32>
    %c0_5 = arith.constant 0 : index
    %c0_6 = arith.constant 0 : index
    %c0_7 = arith.constant 0 : index
    %3 = vector.load %arg7[%c0_5, %c0_6, %c0_7] : memref<3x2x2xf32, #tpu.memory_space<vmem>>, vector<1x2x2xf32>
    %4 = vector.shape_cast %3 : vector<1x2x2xf32> to vector<2x2xf32>
    %5 = vector.extract_strided_slice %1 {offsets = [0, 0], sizes = [32, 1], strides = [1, 1]} : vector<32x2xf32> to vector<32x1xf32>
    %6 = vector.extract_strided_slice %4 {offsets = [0, 0], sizes = [1, 2], strides = [1, 1]} : vector<2x2xf32> to vector<1x2xf32>
    %7 = vector.broadcast %5 : vector<32x1xf32> to vector<32x2xf32>
    %8 = vector.broadcast %6 : vector<1x2xf32> to vector<32x2xf32>
    %9 = arith.mulf %7, %8 : vector<32x2xf32>
    %10 = vector.extract_strided_slice %1 {offsets = [0, 1], sizes = [32, 1], strides = [1, 1]} : vector<32x2xf32> to vector<32x1xf32>
    %11 = vector.extract_strided_slice %4 {offsets = [1, 0], sizes = [1, 2], strides = [1, 1]} : vector<2x2xf32> to vector<1x2xf32>
    %12 = vector.broadcast %10 : vector<32x1xf32> to vector<32x2xf32>
    %13 = vector.broadcast %11 : vector<1x2xf32> to vector<32x2xf32>
    %14 = arith.mulf %12, %13 : vector<32x2xf32>
    %15 = arith.addf %9, %14 : vector<32x2xf32>
    %c0_8 = arith.constant 0 : index
    %c0_9 = arith.constant 0 : index
    %c0_10 = arith.constant 0 : index
    %16 = vector.load %arg8[%c0_8, %c0_9, %c0_10] : memref<3x1x2xf32, #tpu.memory_space<vmem>>, vector<1x1x2xf32>
    %17 = vector.shape_cast %16 : vector<1x1x2xf32> to vector<1x2xf32>
    %18 = vector.broadcast %17 : vector<1x2xf32> to vector<32x2xf32>
    %19 = arith.addf %15, %18 : vector<32x2xf32>
    %20 = math.tanh %19 : vector<32x2xf32>
    %c0_11 = arith.constant 0 : index
    %c0_12 = arith.constant 0 : index
    %c0_13 = arith.constant 0 : index
    %21 = vector.load %arg9[%c0_11, %c0_12, %c0_13] : memref<3x2x3xf32, #tpu.memory_space<vmem>>, vector<1x2x3xf32>
    %22 = vector.shape_cast %21 : vector<1x2x3xf32> to vector<2x3xf32>
    %c0_14 = arith.constant 0 : index
    %c0_15 = arith.constant 0 : index
    %c0_16 = arith.constant 0 : index
    %23 = vector.load %arg10[%c0_14, %c0_15, %c0_16] : memref<3x2x3xf32, #tpu.memory_space<vmem>>, vector<1x2x3xf32>
    %24 = vector.shape_cast %23 : vector<1x2x3xf32> to vector<2x3xf32>
    %cst = arith.constant 0.000000e+00 : f32
    %25 = vector.broadcast %cst : f32 to vector<32x3xf32>
    %26 = vector.extract_strided_slice %20 {offsets = [0, 0], sizes = [32, 1], strides = [1, 1]} : vector<32x2xf32> to vector<32x1xf32>
    %27 = vector.extract_strided_slice %22 {offsets = [0, 0], sizes = [1, 3], strides = [1, 1]} : vector<2x3xf32> to vector<1x3xf32>
    %28 = vector.broadcast %26 : vector<32x1xf32> to vector<32x3xf32>
    %29 = vector.broadcast %27 : vector<1x3xf32> to vector<32x3xf32>
    %30 = arith.subf %28, %29 : vector<32x3xf32>
    %31 = arith.mulf %30, %30 : vector<32x3xf32>
    %32 = vector.extract_strided_slice %24 {offsets = [0, 0], sizes = [1, 3], strides = [1, 1]} : vector<2x3xf32> to vector<1x3xf32>
    %33 = vector.broadcast %32 : vector<1x3xf32> to vector<32x3xf32>
    %34 = arith.mulf %31, %33 : vector<32x3xf32>
    %35 = arith.addf %25, %34 : vector<32x3xf32>
    %36 = vector.extract_strided_slice %20 {offsets = [0, 1], sizes = [32, 1], strides = [1, 1]} : vector<32x2xf32> to vector<32x1xf32>
    %37 = vector.extract_strided_slice %22 {offsets = [1, 0], sizes = [1, 3], strides = [1, 1]} : vector<2x3xf32> to vector<1x3xf32>
    %38 = vector.broadcast %36 : vector<32x1xf32> to vector<32x3xf32>
    %39 = vector.broadcast %37 : vector<1x3xf32> to vector<32x3xf32>
    %40 = arith.subf %38, %39 : vector<32x3xf32>
    %41 = arith.mulf %40, %40 : vector<32x3xf32>
    %42 = vector.extract_strided_slice %24 {offsets = [1, 0], sizes = [1, 3], strides = [1, 1]} : vector<2x3xf32> to vector<1x3xf32>
    %43 = vector.broadcast %42 : vector<1x3xf32> to vector<32x3xf32>
    %44 = arith.mulf %41, %43 : vector<32x3xf32>
    %45 = arith.addf %35, %44 : vector<32x3xf32>
    %46 = math.exp %45 : vector<32x3xf32>
    %c0_17 = arith.constant 0 : index
    %c0_18 = arith.constant 0 : index
    %47 = vector.load %arg22[%c0_17, %c0_18] : memref<32x3xf32, #tpu.memory_space<vmem>>, vector<32x3xf32>
    tpu.vector_store %arg22[%c0_17, %c0_18], %46 {strides = array<i32>} : memref<32x3xf32, #tpu.memory_space<vmem>>, vector<32x3xf32>,
    %c0_19 = arith.constant 0 : index
    %c0_20 = arith.constant 0 : index
    %c0_21 = arith.constant 0 : index
    %48 = vector.load %arg11[%c0_19, %c0_20, %c0_21] : memref<3x32x96xf32, #tpu.memory_space<vmem>>, vector<1x32x96xf32>
    %49 = vector.shape_cast %48 : vector<1x32x96xf32> to vector<32x96xf32>
    %cst_22 = arith.constant dense<0.000000e+00> : vector<16x96xf32>
    %50 = tpu.matmul %0, %49, %cst_22 {dimension_numbers = #tpu.dot_dimension_numbers<[1], [0], [0], [1], [0, 0, 1, 1], [], []>} : vector<16x32xf32>, vector<32x96xf32>, vector<16x96xf32> -> vector<16x96xf32>
    %c0_23 = arith.constant 0 : index
    %c0_24 = arith.constant 0 : index
    %51 = vector.load %arg21[%c0_23, %c0_24] : memref<16x96xf32, #tpu.memory_space<vmem>>, vector<16x96xf32>
    tpu.vector_store %arg21[%c0_23, %c0_24], %50 {strides = array<i32>} : memref<16x96xf32, #tpu.memory_space<vmem>>, vector<16x96xf32>,
    %cst_25 = arith.constant 0.000000e+00 : f32
    %52 = vector.broadcast %cst_25 : f32 to vector<16x32xf32>
    %c0_26 = arith.constant 0 : index
    %c0_27 = arith.constant 0 : index
    %53 = vector.load %arg23[%c0_26, %c0_27] : memref<16x32xf32, #tpu.memory_space<vmem>>, vector<16x32xf32>
    tpu.vector_store %arg23[%c0_26, %c0_27], %52 {strides = array<i32>} : memref<16x32xf32, #tpu.memory_space<vmem>>, vector<16x32xf32>,
    %c0_i32 = arith.constant 0 : i32
    %c32_i32 = arith.constant 32 : i32
    %54 = arith.addi %c0_i32, %c32_i32 : i32
    %c1_i32 = arith.constant 1 : i32
    scf.for %arg24 = %c0_i32 to %54 step %c1_i32  : i32 {
      %c1_i32_147 = arith.constant 1 : i32
      %277 = arith.muli %arg24, %c1_i32_147 : i32
      %c0_i32_148 = arith.constant 0 : i32
      %278 = arith.addi %c0_i32_148, %277 : i32
      %279 = arith.index_cast %278 : i32 to index
      %280 = memref.load %arg1[%279] : memref<32xi32, #tpu.memory_space<smem>>
      %281 = arith.index_cast %278 : i32 to index
      %282 = memref.load %arg2[%281] : memref<32xi32, #tpu.memory_space<smem>>
      %283 = arith.index_cast %280 : i32 to index
      %c0_149 = arith.constant 0 : index
      %284 = vector.load %arg21[%283, %c0_149] : memref<16x96xf32, #tpu.memory_space<vmem>>, vector<1x96xf32>
      %285 = arith.index_cast %278 : i32 to index
      %c0_150 = arith.constant 0 : index
      %286 = vector.load %arg22[%285, %c0_150] : memref<32x3xf32, #tpu.memory_space<vmem>>, vector<1x3xf32>
      %287 = vector.extract_strided_slice %284 {offsets = [0, 0], sizes = [1, 32], strides = [1, 1]} : vector<1x96xf32> to vector<1x32xf32>
      %288 = vector.extract_strided_slice %286 {offsets = [0, 0], sizes = [1, 1], strides = [1, 1]} : vector<1x3xf32> to vector<1x1xf32>
      %289 = vector.broadcast %288 : vector<1x1xf32> to vector<1x32xf32>
      %290 = arith.mulf %287, %289 : vector<1x32xf32>
      %291 = vector.extract_strided_slice %284 {offsets = [0, 32], sizes = [1, 32], strides = [1, 1]} : vector<1x96xf32> to vector<1x32xf32>
      %292 = vector.extract_strided_slice %286 {offsets = [0, 1], sizes = [1, 1], strides = [1, 1]} : vector<1x3xf32> to vector<1x1xf32>
      %293 = vector.broadcast %292 : vector<1x1xf32> to vector<1x32xf32>
      %294 = arith.mulf %291, %293 : vector<1x32xf32>
      %295 = arith.addf %290, %294 : vector<1x32xf32>
      %296 = vector.extract_strided_slice %284 {offsets = [0, 64], sizes = [1, 32], strides = [1, 1]} : vector<1x96xf32> to vector<1x32xf32>
      %297 = vector.extract_strided_slice %286 {offsets = [0, 2], sizes = [1, 1], strides = [1, 1]} : vector<1x3xf32> to vector<1x1xf32>
      %298 = vector.broadcast %297 : vector<1x1xf32> to vector<1x32xf32>
      %299 = arith.mulf %296, %298 : vector<1x32xf32>
      %300 = arith.addf %295, %299 : vector<1x32xf32>
      %301 = arith.index_cast %282 : i32 to index
      %c0_151 = arith.constant 0 : index
      %302 = vector.load %arg23[%301, %c0_151] : memref<16x32xf32, #tpu.memory_space<vmem>>, vector<1x32xf32>
      %303 = arith.addf %302, %300 : vector<1x32xf32>
      %304 = arith.index_cast %282 : i32 to index
      %c0_152 = arith.constant 0 : index
      %305 = vector.load %arg23[%304, %c0_152] : memref<16x32xf32, #tpu.memory_space<vmem>>, vector<1x32xf32>
      tpu.vector_store %arg23[%304, %c0_152], %303 {strides = array<i32>} : memref<16x32xf32, #tpu.memory_space<vmem>>, vector<1x32xf32>,
    }
    %c32_i32_28 = arith.constant 32 : i32
    %c0_29 = arith.constant 0 : index
    %c0_30 = arith.constant 0 : index
    %55 = vector.load %arg23[%c0_29, %c0_30] : memref<16x32xf32, #tpu.memory_space<vmem>>, vector<16x32xf32>
    %56 = vector.broadcast %2 : vector<16x1xf32> to vector<16x32xf32>
    %57 = arith.mulf %55, %56 : vector<16x32xf32>
    %cst_31 = arith.constant dense<0.000000e+00> : vector<32xf32>
    %58 = vector.multi_reduction <add>, %57, %cst_31 [0] : vector<16x32xf32> to vector<32xf32>
    %59 = vector.shape_cast %58 : vector<32xf32> to vector<1x32xf32>
    %cst_32 = arith.constant 1.600000e+01 : f32
    %60 = vector.broadcast %cst_32 : f32 to vector<1x32xf32>
    %61 = arith.divf %59, %60 : vector<1x32xf32>
    %62 = arith.mulf %57, %57 : vector<16x32xf32>
    %cst_33 = arith.constant dense<0.000000e+00> : vector<32xf32>
    %63 = vector.multi_reduction <add>, %62, %cst_33 [0] : vector<16x32xf32> to vector<32xf32>
    %64 = vector.shape_cast %63 : vector<32xf32> to vector<1x32xf32>
    %cst_34 = arith.constant 1.600000e+01 : f32
    %65 = vector.broadcast %cst_34 : f32 to vector<1x32xf32>
    %66 = arith.divf %64, %65 : vector<1x32xf32>
    %67 = arith.mulf %61, %61 : vector<1x32xf32>
    %68 = arith.subf %66, %67 : vector<1x32xf32>
    %69 = vector.broadcast %61 : vector<1x32xf32> to vector<16x32xf32>
    %70 = arith.subf %57, %69 : vector<16x32xf32>
    %cst_35 = arith.constant 9.99999974E-6 : f32
    %71 = vector.broadcast %cst_35 : f32 to vector<1x32xf32>
    %72 = arith.addf %68, %71 : vector<1x32xf32>
    %73 = math.rsqrt %72 : vector<1x32xf32>
    %74 = vector.broadcast %73 : vector<1x32xf32> to vector<16x32xf32>
    %75 = arith.mulf %70, %74 : vector<16x32xf32>
    %c0_36 = arith.constant 0 : index
    %c0_37 = arith.constant 0 : index
    %c0_38 = arith.constant 0 : index
    %76 = vector.load %arg12[%c0_36, %c0_37, %c0_38] : memref<3x1x32xf32, #tpu.memory_space<vmem>>, vector<1x1x32xf32>
    %77 = vector.shape_cast %76 : vector<1x1x32xf32> to vector<1x32xf32>
    %78 = vector.broadcast %77 : vector<1x32xf32> to vector<16x32xf32>
    %79 = arith.mulf %75, %78 : vector<16x32xf32>
    %c0_39 = arith.constant 0 : index
    %c0_40 = arith.constant 0 : index
    %c0_41 = arith.constant 0 : index
    %80 = vector.load %arg13[%c0_39, %c0_40, %c0_41] : memref<3x1x32xf32, #tpu.memory_space<vmem>>, vector<1x1x32xf32>
    %81 = vector.shape_cast %80 : vector<1x1x32xf32> to vector<1x32xf32>
    %82 = vector.broadcast %81 : vector<1x32xf32> to vector<16x32xf32>
    %83 = arith.addf %79, %82 : vector<16x32xf32>
    %cst_42 = arith.constant 0.000000e+00 : f32
    %84 = vector.broadcast %cst_42 : f32 to vector<16x32xf32>
    %85 = arith.maximumf %83, %84 : vector<16x32xf32>
    %86 = arith.addf %85, %0 : vector<16x32xf32>
    %c1 = arith.constant 1 : index
    %c0_43 = arith.constant 0 : index
    %c0_44 = arith.constant 0 : index
    %87 = vector.load %arg7[%c1, %c0_43, %c0_44] : memref<3x2x2xf32, #tpu.memory_space<vmem>>, vector<1x2x2xf32>
    %88 = vector.shape_cast %87 : vector<1x2x2xf32> to vector<2x2xf32>
    %89 = vector.extract_strided_slice %1 {offsets = [0, 0], sizes = [32, 1], strides = [1, 1]} : vector<32x2xf32> to vector<32x1xf32>
    %90 = vector.extract_strided_slice %88 {offsets = [0, 0], sizes = [1, 2], strides = [1, 1]} : vector<2x2xf32> to vector<1x2xf32>
    %91 = vector.broadcast %89 : vector<32x1xf32> to vector<32x2xf32>
    %92 = vector.broadcast %90 : vector<1x2xf32> to vector<32x2xf32>
    %93 = arith.mulf %91, %92 : vector<32x2xf32>
    %94 = vector.extract_strided_slice %1 {offsets = [0, 1], sizes = [32, 1], strides = [1, 1]} : vector<32x2xf32> to vector<32x1xf32>
    %95 = vector.extract_strided_slice %88 {offsets = [1, 0], sizes = [1, 2], strides = [1, 1]} : vector<2x2xf32> to vector<1x2xf32>
    %96 = vector.broadcast %94 : vector<32x1xf32> to vector<32x2xf32>
    %97 = vector.broadcast %95 : vector<1x2xf32> to vector<32x2xf32>
    %98 = arith.mulf %96, %97 : vector<32x2xf32>
    %99 = arith.addf %93, %98 : vector<32x2xf32>
    %c1_45 = arith.constant 1 : index
    %c0_46 = arith.constant 0 : index
    %c0_47 = arith.constant 0 : index
    %100 = vector.load %arg8[%c1_45, %c0_46, %c0_47] : memref<3x1x2xf32, #tpu.memory_space<vmem>>, vector<1x1x2xf32>
    %101 = vector.shape_cast %100 : vector<1x1x2xf32> to vector<1x2xf32>
    %102 = vector.broadcast %101 : vector<1x2xf32> to vector<32x2xf32>
    %103 = arith.addf %99, %102 : vector<32x2xf32>
    %104 = math.tanh %103 : vector<32x2xf32>
    %c1_48 = arith.constant 1 : index
    %c0_49 = arith.constant 0 : index
    %c0_50 = arith.constant 0 : index
    %105 = vector.load %arg9[%c1_48, %c0_49, %c0_50] : memref<3x2x3xf32, #tpu.memory_space<vmem>>, vector<1x2x3xf32>
    %106 = vector.shape_cast %105 : vector<1x2x3xf32> to vector<2x3xf32>
    %c1_51 = arith.constant 1 : index
    %c0_52 = arith.constant 0 : index
    %c0_53 = arith.constant 0 : index
    %107 = vector.load %arg10[%c1_51, %c0_52, %c0_53] : memref<3x2x3xf32, #tpu.memory_space<vmem>>, vector<1x2x3xf32>
    %108 = vector.shape_cast %107 : vector<1x2x3xf32> to vector<2x3xf32>
    %cst_54 = arith.constant 0.000000e+00 : f32
    %109 = vector.broadcast %cst_54 : f32 to vector<32x3xf32>
    %110 = vector.extract_strided_slice %104 {offsets = [0, 0], sizes = [32, 1], strides = [1, 1]} : vector<32x2xf32> to vector<32x1xf32>
    %111 = vector.extract_strided_slice %106 {offsets = [0, 0], sizes = [1, 3], strides = [1, 1]} : vector<2x3xf32> to vector<1x3xf32>
    %112 = vector.broadcast %110 : vector<32x1xf32> to vector<32x3xf32>
    %113 = vector.broadcast %111 : vector<1x3xf32> to vector<32x3xf32>
    %114 = arith.subf %112, %113 : vector<32x3xf32>
    %115 = arith.mulf %114, %114 : vector<32x3xf32>
    %116 = vector.extract_strided_slice %108 {offsets = [0, 0], sizes = [1, 3], strides = [1, 1]} : vector<2x3xf32> to vector<1x3xf32>
    %117 = vector.broadcast %116 : vector<1x3xf32> to vector<32x3xf32>
    %118 = arith.mulf %115, %117 : vector<32x3xf32>
    %119 = arith.addf %109, %118 : vector<32x3xf32>
    %120 = vector.extract_strided_slice %104 {offsets = [0, 1], sizes = [32, 1], strides = [1, 1]} : vector<32x2xf32> to vector<32x1xf32>
    %121 = vector.extract_strided_slice %106 {offsets = [1, 0], sizes = [1, 3], strides = [1, 1]} : vector<2x3xf32> to vector<1x3xf32>
    %122 = vector.broadcast %120 : vector<32x1xf32> to vector<32x3xf32>
    %123 = vector.broadcast %121 : vector<1x3xf32> to vector<32x3xf32>
    %124 = arith.subf %122, %123 : vector<32x3xf32>
    %125 = arith.mulf %124, %124 : vector<32x3xf32>
    %126 = vector.extract_strided_slice %108 {offsets = [1, 0], sizes = [1, 3], strides = [1, 1]} : vector<2x3xf32> to vector<1x3xf32>
    %127 = vector.broadcast %126 : vector<1x3xf32> to vector<32x3xf32>
    %128 = arith.mulf %125, %127 : vector<32x3xf32>
    %129 = arith.addf %119, %128 : vector<32x3xf32>
    %130 = math.exp %129 : vector<32x3xf32>
    %c0_55 = arith.constant 0 : index
    %c0_56 = arith.constant 0 : index
    %131 = vector.load %arg22[%c0_55, %c0_56] : memref<32x3xf32, #tpu.memory_space<vmem>>, vector<32x3xf32>
    tpu.vector_store %arg22[%c0_55, %c0_56], %130 {strides = array<i32>} : memref<32x3xf32, #tpu.memory_space<vmem>>, vector<32x3xf32>,
    %c1_57 = arith.constant 1 : index
    %c0_58 = arith.constant 0 : index
    %c0_59 = arith.constant 0 : index
    %132 = vector.load %arg11[%c1_57, %c0_58, %c0_59] : memref<3x32x96xf32, #tpu.memory_space<vmem>>, vector<1x32x96xf32>
    %133 = vector.shape_cast %132 : vector<1x32x96xf32> to vector<32x96xf32>
    %cst_60 = arith.constant dense<0.000000e+00> : vector<16x96xf32>
    %134 = tpu.matmul %86, %133, %cst_60 {dimension_numbers = #tpu.dot_dimension_numbers<[1], [0], [0], [1], [0, 0, 1, 1], [], []>} : vector<16x32xf32>, vector<32x96xf32>, vector<16x96xf32> -> vector<16x96xf32>
    %c0_61 = arith.constant 0 : index
    %c0_62 = arith.constant 0 : index
    %135 = vector.load %arg21[%c0_61, %c0_62] : memref<16x96xf32, #tpu.memory_space<vmem>>, vector<16x96xf32>
    tpu.vector_store %arg21[%c0_61, %c0_62], %134 {strides = array<i32>} : memref<16x96xf32, #tpu.memory_space<vmem>>, vector<16x96xf32>,
    %cst_63 = arith.constant 0.000000e+00 : f32
    %136 = vector.broadcast %cst_63 : f32 to vector<16x32xf32>
    %c0_64 = arith.constant 0 : index
    %c0_65 = arith.constant 0 : index
    %137 = vector.load %arg23[%c0_64, %c0_65] : memref<16x32xf32, #tpu.memory_space<vmem>>, vector<16x32xf32>
    tpu.vector_store %arg23[%c0_64, %c0_65], %136 {strides = array<i32>} : memref<16x32xf32, #tpu.memory_space<vmem>>, vector<16x32xf32>,
    %c0_i32_66 = arith.constant 0 : i32
    %c32_i32_67 = arith.constant 32 : i32
    %138 = arith.addi %c0_i32_66, %c32_i32_67 : i32
    %c1_i32_68 = arith.constant 1 : i32
    scf.for %arg24 = %c0_i32_66 to %138 step %c1_i32_68  : i32 {
      %c1_i32_147 = arith.constant 1 : i32
      %277 = arith.muli %arg24, %c1_i32_147 : i32
      %c0_i32_148 = arith.constant 0 : i32
      %278 = arith.addi %c0_i32_148, %277 : i32
      %279 = arith.index_cast %278 : i32 to index
      %280 = memref.load %arg1[%279] : memref<32xi32, #tpu.memory_space<smem>>
      %281 = arith.index_cast %278 : i32 to index
      %282 = memref.load %arg2[%281] : memref<32xi32, #tpu.memory_space<smem>>
      %283 = arith.index_cast %280 : i32 to index
      %c0_149 = arith.constant 0 : index
      %284 = vector.load %arg21[%283, %c0_149] : memref<16x96xf32, #tpu.memory_space<vmem>>, vector<1x96xf32>
      %285 = arith.index_cast %278 : i32 to index
      %c0_150 = arith.constant 0 : index
      %286 = vector.load %arg22[%285, %c0_150] : memref<32x3xf32, #tpu.memory_space<vmem>>, vector<1x3xf32>
      %287 = vector.extract_strided_slice %284 {offsets = [0, 0], sizes = [1, 32], strides = [1, 1]} : vector<1x96xf32> to vector<1x32xf32>
      %288 = vector.extract_strided_slice %286 {offsets = [0, 0], sizes = [1, 1], strides = [1, 1]} : vector<1x3xf32> to vector<1x1xf32>
      %289 = vector.broadcast %288 : vector<1x1xf32> to vector<1x32xf32>
      %290 = arith.mulf %287, %289 : vector<1x32xf32>
      %291 = vector.extract_strided_slice %284 {offsets = [0, 32], sizes = [1, 32], strides = [1, 1]} : vector<1x96xf32> to vector<1x32xf32>
      %292 = vector.extract_strided_slice %286 {offsets = [0, 1], sizes = [1, 1], strides = [1, 1]} : vector<1x3xf32> to vector<1x1xf32>
      %293 = vector.broadcast %292 : vector<1x1xf32> to vector<1x32xf32>
      %294 = arith.mulf %291, %293 : vector<1x32xf32>
      %295 = arith.addf %290, %294 : vector<1x32xf32>
      %296 = vector.extract_strided_slice %284 {offsets = [0, 64], sizes = [1, 32], strides = [1, 1]} : vector<1x96xf32> to vector<1x32xf32>
      %297 = vector.extract_strided_slice %286 {offsets = [0, 2], sizes = [1, 1], strides = [1, 1]} : vector<1x3xf32> to vector<1x1xf32>
      %298 = vector.broadcast %297 : vector<1x1xf32> to vector<1x32xf32>
      %299 = arith.mulf %296, %298 : vector<1x32xf32>
      %300 = arith.addf %295, %299 : vector<1x32xf32>
      %301 = arith.index_cast %282 : i32 to index
      %c0_151 = arith.constant 0 : index
      %302 = vector.load %arg23[%301, %c0_151] : memref<16x32xf32, #tpu.memory_space<vmem>>, vector<1x32xf32>
      %303 = arith.addf %302, %300 : vector<1x32xf32>
      %304 = arith.index_cast %282 : i32 to index
      %c0_152 = arith.constant 0 : index
      %305 = vector.load %arg23[%304, %c0_152] : memref<16x32xf32, #tpu.memory_space<vmem>>, vector<1x32xf32>
      tpu.vector_store %arg23[%304, %c0_152], %303 {strides = array<i32>} : memref<16x32xf32, #tpu.memory_space<vmem>>, vector<1x32xf32>,
    }
    %c32_i32_69 = arith.constant 32 : i32
    %c0_70 = arith.constant 0 : index
    %c0_71 = arith.constant 0 : index
    %139 = vector.load %arg23[%c0_70, %c0_71] : memref<16x32xf32, #tpu.memory_space<vmem>>, vector<16x32xf32>
    %140 = vector.broadcast %2 : vector<16x1xf32> to vector<16x32xf32>
    %141 = arith.mulf %139, %140 : vector<16x32xf32>
    %cst_72 = arith.constant dense<0.000000e+00> : vector<32xf32>
    %142 = vector.multi_reduction <add>, %141, %cst_72 [0] : vector<16x32xf32> to vector<32xf32>
    %143 = vector.shape_cast %142 : vector<32xf32> to vector<1x32xf32>
    %cst_73 = arith.constant 1.600000e+01 : f32
    %144 = vector.broadcast %cst_73 : f32 to vector<1x32xf32>
    %145 = arith.divf %143, %144 : vector<1x32xf32>
    %146 = arith.mulf %141, %141 : vector<16x32xf32>
    %cst_74 = arith.constant dense<0.000000e+00> : vector<32xf32>
    %147 = vector.multi_reduction <add>, %146, %cst_74 [0] : vector<16x32xf32> to vector<32xf32>
    %148 = vector.shape_cast %147 : vector<32xf32> to vector<1x32xf32>
    %cst_75 = arith.constant 1.600000e+01 : f32
    %149 = vector.broadcast %cst_75 : f32 to vector<1x32xf32>
    %150 = arith.divf %148, %149 : vector<1x32xf32>
    %151 = arith.mulf %145, %145 : vector<1x32xf32>
    %152 = arith.subf %150, %151 : vector<1x32xf32>
    %153 = vector.broadcast %145 : vector<1x32xf32> to vector<16x32xf32>
    %154 = arith.subf %141, %153 : vector<16x32xf32>
    %cst_76 = arith.constant 9.99999974E-6 : f32
    %155 = vector.broadcast %cst_76 : f32 to vector<1x32xf32>
    %156 = arith.addf %152, %155 : vector<1x32xf32>
    %157 = math.rsqrt %156 : vector<1x32xf32>
    %158 = vector.broadcast %157 : vector<1x32xf32> to vector<16x32xf32>
    %159 = arith.mulf %154, %158 : vector<16x32xf32>
    %c1_77 = arith.constant 1 : index
    %c0_78 = arith.constant 0 : index
    %c0_79 = arith.constant 0 : index
    %160 = vector.load %arg12[%c1_77, %c0_78, %c0_79] : memref<3x1x32xf32, #tpu.memory_space<vmem>>, vector<1x1x32xf32>
    %161 = vector.shape_cast %160 : vector<1x1x32xf32> to vector<1x32xf32>
    %162 = vector.broadcast %161 : vector<1x32xf32> to vector<16x32xf32>
    %163 = arith.mulf %159, %162 : vector<16x32xf32>
    %c1_80 = arith.constant 1 : index
    %c0_81 = arith.constant 0 : index
    %c0_82 = arith.constant 0 : index
    %164 = vector.load %arg13[%c1_80, %c0_81, %c0_82] : memref<3x1x32xf32, #tpu.memory_space<vmem>>, vector<1x1x32xf32>
    %165 = vector.shape_cast %164 : vector<1x1x32xf32> to vector<1x32xf32>
    %166 = vector.broadcast %165 : vector<1x32xf32> to vector<16x32xf32>
    %167 = arith.addf %163, %166 : vector<16x32xf32>
    %cst_83 = arith.constant 0.000000e+00 : f32
    %168 = vector.broadcast %cst_83 : f32 to vector<16x32xf32>
    %169 = arith.maximumf %167, %168 : vector<16x32xf32>
    %170 = arith.addf %169, %86 : vector<16x32xf32>
    %c2 = arith.constant 2 : index
    %c0_84 = arith.constant 0 : index
    %c0_85 = arith.constant 0 : index
    %171 = vector.load %arg7[%c2, %c0_84, %c0_85] : memref<3x2x2xf32, #tpu.memory_space<vmem>>, vector<1x2x2xf32>
    %172 = vector.shape_cast %171 : vector<1x2x2xf32> to vector<2x2xf32>
    %173 = vector.extract_strided_slice %1 {offsets = [0, 0], sizes = [32, 1], strides = [1, 1]} : vector<32x2xf32> to vector<32x1xf32>
    %174 = vector.extract_strided_slice %172 {offsets = [0, 0], sizes = [1, 2], strides = [1, 1]} : vector<2x2xf32> to vector<1x2xf32>
    %175 = vector.broadcast %173 : vector<32x1xf32> to vector<32x2xf32>
    %176 = vector.broadcast %174 : vector<1x2xf32> to vector<32x2xf32>
    %177 = arith.mulf %175, %176 : vector<32x2xf32>
    %178 = vector.extract_strided_slice %1 {offsets = [0, 1], sizes = [32, 1], strides = [1, 1]} : vector<32x2xf32> to vector<32x1xf32>
    %179 = vector.extract_strided_slice %172 {offsets = [1, 0], sizes = [1, 2], strides = [1, 1]} : vector<2x2xf32> to vector<1x2xf32>
    %180 = vector.broadcast %178 : vector<32x1xf32> to vector<32x2xf32>
    %181 = vector.broadcast %179 : vector<1x2xf32> to vector<32x2xf32>
    %182 = arith.mulf %180, %181 : vector<32x2xf32>
    %183 = arith.addf %177, %182 : vector<32x2xf32>
    %c2_86 = arith.constant 2 : index
    %c0_87 = arith.constant 0 : index
    %c0_88 = arith.constant 0 : index
    %184 = vector.load %arg8[%c2_86, %c0_87, %c0_88] : memref<3x1x2xf32, #tpu.memory_space<vmem>>, vector<1x1x2xf32>
    %185 = vector.shape_cast %184 : vector<1x1x2xf32> to vector<1x2xf32>
    %186 = vector.broadcast %185 : vector<1x2xf32> to vector<32x2xf32>
    %187 = arith.addf %183, %186 : vector<32x2xf32>
    %188 = math.tanh %187 : vector<32x2xf32>
    %c2_89 = arith.constant 2 : index
    %c0_90 = arith.constant 0 : index
    %c0_91 = arith.constant 0 : index
    %189 = vector.load %arg9[%c2_89, %c0_90, %c0_91] : memref<3x2x3xf32, #tpu.memory_space<vmem>>, vector<1x2x3xf32>
    %190 = vector.shape_cast %189 : vector<1x2x3xf32> to vector<2x3xf32>
    %c2_92 = arith.constant 2 : index
    %c0_93 = arith.constant 0 : index
    %c0_94 = arith.constant 0 : index
    %191 = vector.load %arg10[%c2_92, %c0_93, %c0_94] : memref<3x2x3xf32, #tpu.memory_space<vmem>>, vector<1x2x3xf32>
    %192 = vector.shape_cast %191 : vector<1x2x3xf32> to vector<2x3xf32>
    %cst_95 = arith.constant 0.000000e+00 : f32
    %193 = vector.broadcast %cst_95 : f32 to vector<32x3xf32>
    %194 = vector.extract_strided_slice %188 {offsets = [0, 0], sizes = [32, 1], strides = [1, 1]} : vector<32x2xf32> to vector<32x1xf32>
    %195 = vector.extract_strided_slice %190 {offsets = [0, 0], sizes = [1, 3], strides = [1, 1]} : vector<2x3xf32> to vector<1x3xf32>
    %196 = vector.broadcast %194 : vector<32x1xf32> to vector<32x3xf32>
    %197 = vector.broadcast %195 : vector<1x3xf32> to vector<32x3xf32>
    %198 = arith.subf %196, %197 : vector<32x3xf32>
    %199 = arith.mulf %198, %198 : vector<32x3xf32>
    %200 = vector.extract_strided_slice %192 {offsets = [0, 0], sizes = [1, 3], strides = [1, 1]} : vector<2x3xf32> to vector<1x3xf32>
    %201 = vector.broadcast %200 : vector<1x3xf32> to vector<32x3xf32>
    %202 = arith.mulf %199, %201 : vector<32x3xf32>
    %203 = arith.addf %193, %202 : vector<32x3xf32>
    %204 = vector.extract_strided_slice %188 {offsets = [0, 1], sizes = [32, 1], strides = [1, 1]} : vector<32x2xf32> to vector<32x1xf32>
    %205 = vector.extract_strided_slice %190 {offsets = [1, 0], sizes = [1, 3], strides = [1, 1]} : vector<2x3xf32> to vector<1x3xf32>
    %206 = vector.broadcast %204 : vector<32x1xf32> to vector<32x3xf32>
    %207 = vector.broadcast %205 : vector<1x3xf32> to vector<32x3xf32>
    %208 = arith.subf %206, %207 : vector<32x3xf32>
    %209 = arith.mulf %208, %208 : vector<32x3xf32>
    %210 = vector.extract_strided_slice %192 {offsets = [1, 0], sizes = [1, 3], strides = [1, 1]} : vector<2x3xf32> to vector<1x3xf32>
    %211 = vector.broadcast %210 : vector<1x3xf32> to vector<32x3xf32>
    %212 = arith.mulf %209, %211 : vector<32x3xf32>
    %213 = arith.addf %203, %212 : vector<32x3xf32>
    %214 = math.exp %213 : vector<32x3xf32>
    %c0_96 = arith.constant 0 : index
    %c0_97 = arith.constant 0 : index
    %215 = vector.load %arg22[%c0_96, %c0_97] : memref<32x3xf32, #tpu.memory_space<vmem>>, vector<32x3xf32>
    tpu.vector_store %arg22[%c0_96, %c0_97], %214 {strides = array<i32>} : memref<32x3xf32, #tpu.memory_space<vmem>>, vector<32x3xf32>,
    %c2_98 = arith.constant 2 : index
    %c0_99 = arith.constant 0 : index
    %c0_100 = arith.constant 0 : index
    %216 = vector.load %arg11[%c2_98, %c0_99, %c0_100] : memref<3x32x96xf32, #tpu.memory_space<vmem>>, vector<1x32x96xf32>
    %217 = vector.shape_cast %216 : vector<1x32x96xf32> to vector<32x96xf32>
    %cst_101 = arith.constant dense<0.000000e+00> : vector<16x96xf32>
    %218 = tpu.matmul %170, %217, %cst_101 {dimension_numbers = #tpu.dot_dimension_numbers<[1], [0], [0], [1], [0, 0, 1, 1], [], []>} : vector<16x32xf32>, vector<32x96xf32>, vector<16x96xf32> -> vector<16x96xf32>
    %c0_102 = arith.constant 0 : index
    %c0_103 = arith.constant 0 : index
    %219 = vector.load %arg21[%c0_102, %c0_103] : memref<16x96xf32, #tpu.memory_space<vmem>>, vector<16x96xf32>
    tpu.vector_store %arg21[%c0_102, %c0_103], %218 {strides = array<i32>} : memref<16x96xf32, #tpu.memory_space<vmem>>, vector<16x96xf32>,
    %cst_104 = arith.constant 0.000000e+00 : f32
    %220 = vector.broadcast %cst_104 : f32 to vector<16x32xf32>
    %c0_105 = arith.constant 0 : index
    %c0_106 = arith.constant 0 : index
    %221 = vector.load %arg23[%c0_105, %c0_106] : memref<16x32xf32, #tpu.memory_space<vmem>>, vector<16x32xf32>
    tpu.vector_store %arg23[%c0_105, %c0_106], %220 {strides = array<i32>} : memref<16x32xf32, #tpu.memory_space<vmem>>, vector<16x32xf32>,
    %c0_i32_107 = arith.constant 0 : i32
    %c32_i32_108 = arith.constant 32 : i32
    %222 = arith.addi %c0_i32_107, %c32_i32_108 : i32
    %c1_i32_109 = arith.constant 1 : i32
    scf.for %arg24 = %c0_i32_107 to %222 step %c1_i32_109  : i32 {
      %c1_i32_147 = arith.constant 1 : i32
      %277 = arith.muli %arg24, %c1_i32_147 : i32
      %c0_i32_148 = arith.constant 0 : i32
      %278 = arith.addi %c0_i32_148, %277 : i32
      %279 = arith.index_cast %278 : i32 to index
      %280 = memref.load %arg1[%279] : memref<32xi32, #tpu.memory_space<smem>>
      %281 = arith.index_cast %278 : i32 to index
      %282 = memref.load %arg2[%281] : memref<32xi32, #tpu.memory_space<smem>>
      %283 = arith.index_cast %280 : i32 to index
      %c0_149 = arith.constant 0 : index
      %284 = vector.load %arg21[%283, %c0_149] : memref<16x96xf32, #tpu.memory_space<vmem>>, vector<1x96xf32>
      %285 = arith.index_cast %278 : i32 to index
      %c0_150 = arith.constant 0 : index
      %286 = vector.load %arg22[%285, %c0_150] : memref<32x3xf32, #tpu.memory_space<vmem>>, vector<1x3xf32>
      %287 = vector.extract_strided_slice %284 {offsets = [0, 0], sizes = [1, 32], strides = [1, 1]} : vector<1x96xf32> to vector<1x32xf32>
      %288 = vector.extract_strided_slice %286 {offsets = [0, 0], sizes = [1, 1], strides = [1, 1]} : vector<1x3xf32> to vector<1x1xf32>
      %289 = vector.broadcast %288 : vector<1x1xf32> to vector<1x32xf32>
      %290 = arith.mulf %287, %289 : vector<1x32xf32>
      %291 = vector.extract_strided_slice %284 {offsets = [0, 32], sizes = [1, 32], strides = [1, 1]} : vector<1x96xf32> to vector<1x32xf32>
      %292 = vector.extract_strided_slice %286 {offsets = [0, 1], sizes = [1, 1], strides = [1, 1]} : vector<1x3xf32> to vector<1x1xf32>
      %293 = vector.broadcast %292 : vector<1x1xf32> to vector<1x32xf32>
      %294 = arith.mulf %291, %293 : vector<1x32xf32>
      %295 = arith.addf %290, %294 : vector<1x32xf32>
      %296 = vector.extract_strided_slice %284 {offsets = [0, 64], sizes = [1, 32], strides = [1, 1]} : vector<1x96xf32> to vector<1x32xf32>
      %297 = vector.extract_strided_slice %286 {offsets = [0, 2], sizes = [1, 1], strides = [1, 1]} : vector<1x3xf32> to vector<1x1xf32>
      %298 = vector.broadcast %297 : vector<1x1xf32> to vector<1x32xf32>
      %299 = arith.mulf %296, %298 : vector<1x32xf32>
      %300 = arith.addf %295, %299 : vector<1x32xf32>
      %301 = arith.index_cast %282 : i32 to index
      %c0_151 = arith.constant 0 : index
      %302 = vector.load %arg23[%301, %c0_151] : memref<16x32xf32, #tpu.memory_space<vmem>>, vector<1x32xf32>
      %303 = arith.addf %302, %300 : vector<1x32xf32>
      %304 = arith.index_cast %282 : i32 to index
      %c0_152 = arith.constant 0 : index
      %305 = vector.load %arg23[%304, %c0_152] : memref<16x32xf32, #tpu.memory_space<vmem>>, vector<1x32xf32>
      tpu.vector_store %arg23[%304, %c0_152], %303 {strides = array<i32>} : memref<16x32xf32, #tpu.memory_space<vmem>>, vector<1x32xf32>,
    }
    %c32_i32_110 = arith.constant 32 : i32
    %c0_111 = arith.constant 0 : index
    %c0_112 = arith.constant 0 : index
    %223 = vector.load %arg23[%c0_111, %c0_112] : memref<16x32xf32, #tpu.memory_space<vmem>>, vector<16x32xf32>
    %224 = vector.broadcast %2 : vector<16x1xf32> to vector<16x32xf32>
    %225 = arith.mulf %223, %224 : vector<16x32xf32>
    %cst_113 = arith.constant dense<0.000000e+00> : vector<32xf32>
    %226 = vector.multi_reduction <add>, %225, %cst_113 [0] : vector<16x32xf32> to vector<32xf32>
    %227 = vector.shape_cast %226 : vector<32xf32> to vector<1x32xf32>
    %cst_114 = arith.constant 1.600000e+01 : f32
    %228 = vector.broadcast %cst_114 : f32 to vector<1x32xf32>
    %229 = arith.divf %227, %228 : vector<1x32xf32>
    %230 = arith.mulf %225, %225 : vector<16x32xf32>
    %cst_115 = arith.constant dense<0.000000e+00> : vector<32xf32>
    %231 = vector.multi_reduction <add>, %230, %cst_115 [0] : vector<16x32xf32> to vector<32xf32>
    %232 = vector.shape_cast %231 : vector<32xf32> to vector<1x32xf32>
    %cst_116 = arith.constant 1.600000e+01 : f32
    %233 = vector.broadcast %cst_116 : f32 to vector<1x32xf32>
    %234 = arith.divf %232, %233 : vector<1x32xf32>
    %235 = arith.mulf %229, %229 : vector<1x32xf32>
    %236 = arith.subf %234, %235 : vector<1x32xf32>
    %237 = vector.broadcast %229 : vector<1x32xf32> to vector<16x32xf32>
    %238 = arith.subf %225, %237 : vector<16x32xf32>
    %cst_117 = arith.constant 9.99999974E-6 : f32
    %239 = vector.broadcast %cst_117 : f32 to vector<1x32xf32>
    %240 = arith.addf %236, %239 : vector<1x32xf32>
    %241 = math.rsqrt %240 : vector<1x32xf32>
    %242 = vector.broadcast %241 : vector<1x32xf32> to vector<16x32xf32>
    %243 = arith.mulf %238, %242 : vector<16x32xf32>
    %c2_118 = arith.constant 2 : index
    %c0_119 = arith.constant 0 : index
    %c0_120 = arith.constant 0 : index
    %244 = vector.load %arg12[%c2_118, %c0_119, %c0_120] : memref<3x1x32xf32, #tpu.memory_space<vmem>>, vector<1x1x32xf32>
    %245 = vector.shape_cast %244 : vector<1x1x32xf32> to vector<1x32xf32>
    %246 = vector.broadcast %245 : vector<1x32xf32> to vector<16x32xf32>
    %247 = arith.mulf %243, %246 : vector<16x32xf32>
    %c2_121 = arith.constant 2 : index
    %c0_122 = arith.constant 0 : index
    %c0_123 = arith.constant 0 : index
    %248 = vector.load %arg13[%c2_121, %c0_122, %c0_123] : memref<3x1x32xf32, #tpu.memory_space<vmem>>, vector<1x1x32xf32>
    %249 = vector.shape_cast %248 : vector<1x1x32xf32> to vector<1x32xf32>
    %250 = vector.broadcast %249 : vector<1x32xf32> to vector<16x32xf32>
    %251 = arith.addf %247, %250 : vector<16x32xf32>
    %cst_124 = arith.constant 0.000000e+00 : f32
    %252 = vector.broadcast %cst_124 : f32 to vector<16x32xf32>
    %253 = arith.maximumf %251, %252 : vector<16x32xf32>
    %254 = arith.addf %253, %170 : vector<16x32xf32>
    %c0_125 = arith.constant 0 : index
    %c0_126 = arith.constant 0 : index
    %255 = vector.load %arg6[%c0_125, %c0_126] : memref<2x16xf32, #tpu.memory_space<vmem>>, vector<2x16xf32>
    %cst_127 = arith.constant dense<0.000000e+00> : vector<2x32xf32>
    %256 = tpu.matmul %255, %254, %cst_127 {dimension_numbers = #tpu.dot_dimension_numbers<[1], [0], [0], [1], [0, 0, 1, 1], [], []>} : vector<2x16xf32>, vector<16x32xf32>, vector<2x32xf32> -> vector<2x32xf32>
    %c0_128 = arith.constant 0 : index
    %c0_129 = arith.constant 0 : index
    %257 = vector.load %arg14[%c0_128, %c0_129] : memref<32x16xf32, #tpu.memory_space<vmem>>, vector<32x16xf32>
    %cst_130 = arith.constant dense<0.000000e+00> : vector<2x16xf32>
    %258 = tpu.matmul %256, %257, %cst_130 {dimension_numbers = #tpu.dot_dimension_numbers<[1], [0], [0], [1], [0, 0, 1, 1], [], []>} : vector<2x32xf32>, vector<32x16xf32>, vector<2x16xf32> -> vector<2x16xf32>
    %c0_131 = arith.constant 0 : index
    %c0_132 = arith.constant 0 : index
    %259 = vector.load %arg15[%c0_131, %c0_132] : memref<1x16xf32, #tpu.memory_space<vmem>>, vector<1x16xf32>
    %260 = vector.broadcast %259 : vector<1x16xf32> to vector<2x16xf32>
    %261 = arith.addf %258, %260 : vector<2x16xf32>
    %cst_133 = arith.constant 0.000000e+00 : f32
    %262 = vector.broadcast %cst_133 : f32 to vector<2x16xf32>
    %263 = arith.maximumf %261, %262 : vector<2x16xf32>
    %c0_134 = arith.constant 0 : index
    %c0_135 = arith.constant 0 : index
    %264 = vector.load %arg16[%c0_134, %c0_135] : memref<16x8xf32, #tpu.memory_space<vmem>>, vector<16x8xf32>
    %cst_136 = arith.constant dense<0.000000e+00> : vector<2x8xf32>
    %265 = tpu.matmul %263, %264, %cst_136 {dimension_numbers = #tpu.dot_dimension_numbers<[1], [0], [0], [1], [0, 0, 1, 1], [], []>} : vector<2x16xf32>, vector<16x8xf32>, vector<2x8xf32> -> vector<2x8xf32>
    %c0_137 = arith.constant 0 : index
    %c0_138 = arith.constant 0 : index
    %266 = vector.load %arg17[%c0_137, %c0_138] : memref<1x8xf32, #tpu.memory_space<vmem>>, vector<1x8xf32>
    %267 = vector.broadcast %266 : vector<1x8xf32> to vector<2x8xf32>
    %268 = arith.addf %265, %267 : vector<2x8xf32>
    %cst_139 = arith.constant 0.000000e+00 : f32
    %269 = vector.broadcast %cst_139 : f32 to vector<2x8xf32>
    %270 = arith.maximumf %268, %269 : vector<2x8xf32>
    %c0_140 = arith.constant 0 : index
    %c0_141 = arith.constant 0 : index
    %271 = vector.load %arg18[%c0_140, %c0_141] : memref<8x1xf32, #tpu.memory_space<vmem>>, vector<8x1xf32>
    %cst_142 = arith.constant dense<0.000000e+00> : vector<2x1xf32>
    %272 = tpu.matmul %270, %271, %cst_142 {dimension_numbers = #tpu.dot_dimension_numbers<[1], [0], [0], [1], [0, 0, 1, 1], [], []>} : vector<2x8xf32>, vector<8x1xf32>, vector<2x1xf32> -> vector<2x1xf32>
    %c0_143 = arith.constant 0 : index
    %c0_144 = arith.constant 0 : index
    %273 = vector.load %arg19[%c0_143, %c0_144] : memref<1x1xf32, #tpu.memory_space<vmem>>, vector<1x1xf32>
    %274 = vector.broadcast %273 : vector<1x1xf32> to vector<2x1xf32>
    %275 = arith.addf %272, %274 : vector<2x1xf32>
    %c0_145 = arith.constant 0 : index
    %c0_146 = arith.constant 0 : index
    %276 = vector.load %arg20[%c0_145, %c0_146] : memref<2x1xf32, #tpu.memory_space<vmem>>, vector<2x1xf32>
    tpu.vector_store %arg20[%c0_145, %c0_146], %275 {strides = array<i32>} : memref<2x1xf32, #tpu.memory_space<vmem>>, vector<2x1xf32>,
    return
  }
  func.func @transform_0(%arg0: i32, %arg1: memref<32xi32, #tpu.memory_space<smem>>, %arg2: memref<32xi32, #tpu.memory_space<smem>>) -> (i32, i32) {
    %c0_i32 = arith.constant 0 : i32
    %c0_i32_0 = arith.constant 0 : i32
    %c0_i32_1 = arith.constant 0 : i32
    return %c0_i32, %c0_i32_0 : i32, i32
  }
  func.func @transform_1(%arg0: i32, %arg1: memref<32xi32, #tpu.memory_space<smem>>, %arg2: memref<32xi32, #tpu.memory_space<smem>>) -> (i32, i32) {
    %c0_i32 = arith.constant 0 : i32
    %c0_i32_0 = arith.constant 0 : i32
    %c0_i32_1 = arith.constant 0 : i32
    return %c0_i32, %c0_i32_0 : i32, i32
  }
  func.func @transform_2(%arg0: i32, %arg1: memref<32xi32, #tpu.memory_space<smem>>, %arg2: memref<32xi32, #tpu.memory_space<smem>>) -> (i32, i32) {
    %c0_i32 = arith.constant 0 : i32
    %c0_i32_0 = arith.constant 0 : i32
    %c0_i32_1 = arith.constant 0 : i32
    return %c0_i32, %c0_i32_0 : i32, i32
  }
  func.func @transform_3(%arg0: i32, %arg1: memref<32xi32, #tpu.memory_space<smem>>, %arg2: memref<32xi32, #tpu.memory_space<smem>>) -> (i32, i32) {
    %c0_i32 = arith.constant 0 : i32
    %c0_i32_0 = arith.constant 0 : i32
    %c0_i32_1 = arith.constant 0 : i32
    return %c0_i32, %c0_i32_0 : i32, i32
  }
  func.func @transform_4(%arg0: i32, %arg1: memref<32xi32, #tpu.memory_space<smem>>, %arg2: memref<32xi32, #tpu.memory_space<smem>>) -> (i32, i32, i32) {
    %c0_i32 = arith.constant 0 : i32
    %c0_i32_0 = arith.constant 0 : i32
    %c0_i32_1 = arith.constant 0 : i32
    %c0_i32_2 = arith.constant 0 : i32
    return %c0_i32, %c0_i32_0, %c0_i32_1 : i32, i32, i32
  }
  func.func @transform_5(%arg0: i32, %arg1: memref<32xi32, #tpu.memory_space<smem>>, %arg2: memref<32xi32, #tpu.memory_space<smem>>) -> (i32, i32, i32) {
    %c0_i32 = arith.constant 0 : i32
    %c0_i32_0 = arith.constant 0 : i32
    %c0_i32_1 = arith.constant 0 : i32
    %c0_i32_2 = arith.constant 0 : i32
    return %c0_i32, %c0_i32_0, %c0_i32_1 : i32, i32, i32
  }
  func.func @transform_6(%arg0: i32, %arg1: memref<32xi32, #tpu.memory_space<smem>>, %arg2: memref<32xi32, #tpu.memory_space<smem>>) -> (i32, i32, i32) {
    %c0_i32 = arith.constant 0 : i32
    %c0_i32_0 = arith.constant 0 : i32
    %c0_i32_1 = arith.constant 0 : i32
    %c0_i32_2 = arith.constant 0 : i32
    return %c0_i32, %c0_i32_0, %c0_i32_1 : i32, i32, i32
  }
  func.func @transform_7(%arg0: i32, %arg1: memref<32xi32, #tpu.memory_space<smem>>, %arg2: memref<32xi32, #tpu.memory_space<smem>>) -> (i32, i32, i32) {
    %c0_i32 = arith.constant 0 : i32
    %c0_i32_0 = arith.constant 0 : i32
    %c0_i32_1 = arith.constant 0 : i32
    %c0_i32_2 = arith.constant 0 : i32
    return %c0_i32, %c0_i32_0, %c0_i32_1 : i32, i32, i32
  }
  func.func @transform_8(%arg0: i32, %arg1: memref<32xi32, #tpu.memory_space<smem>>, %arg2: memref<32xi32, #tpu.memory_space<smem>>) -> (i32, i32, i32) {
    %c0_i32 = arith.constant 0 : i32
    %c0_i32_0 = arith.constant 0 : i32
    %c0_i32_1 = arith.constant 0 : i32
    %c0_i32_2 = arith.constant 0 : i32
    return %c0_i32, %c0_i32_0, %c0_i32_1 : i32, i32, i32
  }
  func.func @transform_9(%arg0: i32, %arg1: memref<32xi32, #tpu.memory_space<smem>>, %arg2: memref<32xi32, #tpu.memory_space<smem>>) -> (i32, i32, i32) {
    %c0_i32 = arith.constant 0 : i32
    %c0_i32_0 = arith.constant 0 : i32
    %c0_i32_1 = arith.constant 0 : i32
    %c0_i32_2 = arith.constant 0 : i32
    return %c0_i32, %c0_i32_0, %c0_i32_1 : i32, i32, i32
  }
  func.func @transform_10(%arg0: i32, %arg1: memref<32xi32, #tpu.memory_space<smem>>, %arg2: memref<32xi32, #tpu.memory_space<smem>>) -> (i32, i32, i32) {
    %c0_i32 = arith.constant 0 : i32
    %c0_i32_0 = arith.constant 0 : i32
    %c0_i32_1 = arith.constant 0 : i32
    %c0_i32_2 = arith.constant 0 : i32
    return %c0_i32, %c0_i32_0, %c0_i32_1 : i32, i32, i32
  }
  func.func @transform_11(%arg0: i32, %arg1: memref<32xi32, #tpu.memory_space<smem>>, %arg2: memref<32xi32, #tpu.memory_space<smem>>) -> (i32, i32) {
    %c0_i32 = arith.constant 0 : i32
    %c0_i32_0 = arith.constant 0 : i32
    %c0_i32_1 = arith.constant 0 : i32
    return %c0_i32, %c0_i32_0 : i32, i32
  }
  func.func @transform_12(%arg0: i32, %arg1: memref<32xi32, #tpu.memory_space<smem>>, %arg2: memref<32xi32, #tpu.memory_space<smem>>) -> (i32, i32) {
    %c0_i32 = arith.constant 0 : i32
    %c0_i32_0 = arith.constant 0 : i32
    %c0_i32_1 = arith.constant 0 : i32
    return %c0_i32, %c0_i32_0 : i32, i32
  }
  func.func @transform_13(%arg0: i32, %arg1: memref<32xi32, #tpu.memory_space<smem>>, %arg2: memref<32xi32, #tpu.memory_space<smem>>) -> (i32, i32) {
    %c0_i32 = arith.constant 0 : i32
    %c0_i32_0 = arith.constant 0 : i32
    %c0_i32_1 = arith.constant 0 : i32
    return %c0_i32, %c0_i32_0 : i32, i32
  }
  func.func @transform_14(%arg0: i32, %arg1: memref<32xi32, #tpu.memory_space<smem>>, %arg2: memref<32xi32, #tpu.memory_space<smem>>) -> (i32, i32) {
    %c0_i32 = arith.constant 0 : i32
    %c0_i32_0 = arith.constant 0 : i32
    %c0_i32_1 = arith.constant 0 : i32
    return %c0_i32, %c0_i32_0 : i32, i32
  }
  func.func @transform_15(%arg0: i32, %arg1: memref<32xi32, #tpu.memory_space<smem>>, %arg2: memref<32xi32, #tpu.memory_space<smem>>) -> (i32, i32) {
    %c0_i32 = arith.constant 0 : i32
    %c0_i32_0 = arith.constant 0 : i32
    %c0_i32_1 = arith.constant 0 : i32
    return %c0_i32, %c0_i32_0 : i32, i32
  }
  func.func @transform_16(%arg0: i32, %arg1: memref<32xi32, #tpu.memory_space<smem>>, %arg2: memref<32xi32, #tpu.memory_space<smem>>) -> (i32, i32) {
    %c0_i32 = arith.constant 0 : i32
    %c0_i32_0 = arith.constant 0 : i32
    %c0_i32_1 = arith.constant 0 : i32
    return %c0_i32, %c0_i32_0 : i32, i32
  }
  func.func @transform_17(%arg0: i32, %arg1: memref<32xi32, #tpu.memory_space<smem>>, %arg2: memref<32xi32, #tpu.memory_space<smem>>) -> (i32, i32) {
    %c0_i32 = arith.constant 0 : i32
    %c0_i32_0 = arith.constant 0 : i32
    %c0_i32_1 = arith.constant 0 : i32
    return %c0_i32, %c0_i32_0 : i32, i32
  }
}

</mosaic_0001>

<llo_original>
// kernel: tpu_custom_call.1
$region0: #{tpu_custom_call.1}
  #allocation0 [shape = 'u32[]', space=smem, size = 0x4, offset = 0x4, fixed_abs, tag = 'smem constant byte address 0x4 - core index']
  #allocation1 [shape = 'u32[144,128]{1,0:T(1,128)}', space=vmem, size = 0x12000, scoped, tag = 'internal scratch']
  #allocation2 [shape = 'f32[16,96]{1,0:T(8,128)}', space=vmem, size = 0x2000, scoped, tag = 'scratch operand']
  #allocation3 [shape = 'f32[32,3]{1,0:T(8,128)}', space=vmem, size = 0x4000, scoped, tag = 'scratch operand']
  #allocation4 [shape = 'f32[16,32]{1,0:T(8,128)}', space=vmem, size = 0x2000, scoped, tag = 'scratch operand']
  #allocation5 [shape = 's32[1]{0}', space=sflag, size = 0x4, scoped, tag = 'scoped memory for tpu_custom_call.1']
  #allocation6 [shape = 'u8[512]{0}', space=smem, size = 0x200, scoped, tag = 'prefetched SMEM operand 0']
  #allocation7 [shape = 'u8[512]{0}', space=smem, size = 0x200, scoped, tag = 'prefetched SMEM operand 1']
  #allocation8 [shape = 'f32[1,1]{1,0:T(1,128)S(1)}', space=vmem, size = 0x200, scoped, tag = 'scoped memory for tpu_custom_call.1']
  %s0 = inlined_call_operand.vmem [shape: s32[32], index: 0, kind: input, shape index: {}]
  %s1 = inlined_call_operand.vmem [shape: s32[32], index: 1, kind: input, shape index: {}]
  %s2 = inlined_call_operand.vmem [shape: f32[16,32], index: 2, kind: input, shape index: {}]
  %s3 = inlined_call_operand.vmem [shape: f32[32,2], index: 3, kind: input, shape index: {}]
  %s4 = inlined_call_operand.vmem [shape: f32[16,1], index: 4, kind: input, shape index: {}]
  %s5 = inlined_call_operand.vmem [shape: f32[2,16], index: 5, kind: input, shape index: {}]
  %s6 = inlined_call_operand.vmem [shape: f32[3,2,2], index: 6, kind: input, shape index: {}]
  %s7 = inlined_call_operand.vmem [shape: f32[3,1,2], index: 7, kind: input, shape index: {}]
  %s8 = inlined_call_operand.vmem [shape: f32[3,2,3], index: 8, kind: input, shape index: {}]
  %s9 = inlined_call_operand.vmem [shape: f32[3,2,3], index: 9, kind: input, shape index: {}]
  %s10 = inlined_call_operand.vmem [shape: f32[3,32,96], index: 10, kind: input, shape index: {}]
  %s11 = inlined_call_operand.vmem [shape: f32[3,1,32], index: 11, kind: input, shape index: {}]
  %s12 = inlined_call_operand.vmem [shape: f32[3,1,32], index: 12, kind: input, shape index: {}]
  %s13 = inlined_call_operand.vmem [shape: f32[32,16], index: 13, kind: input, shape index: {}]
  %s14 = inlined_call_operand.vmem [shape: f32[1,16], index: 14, kind: input, shape index: {}]
  %s15 = inlined_call_operand.vmem [shape: f32[16,8], index: 15, kind: input, shape index: {}]
  %s16 = inlined_call_operand.vmem [shape: f32[1,8], index: 16, kind: input, shape index: {}]
  %s17 = inlined_call_operand.vmem [shape: f32[8,1], index: 17, kind: input, shape index: {}]
  %s18 = inlined_call_operand.<no memory space> [shape: f32[1,1], index: 18, kind: input, shape index: {}]
  %s19 = inlined_call_operand.vmem [shape: f32[2,1], index: 19, kind: output, shape index: {}]
  %s20 = sld [smem:[#allocation0]]
  $region99: #{tpu_custom_call.1} parent=0
    _
  %s22 = ssub.s32 1, %s20
  %s23 = scalar_select 0, %s22, %s20
  %s24 = sshll.u32 %s0, 4
  %s25 = int_to_ptr.vmem [resolvable:$true] %s24
  %27 = dma.vmem_to_smem %s25, 16, [#allocation6], [#allocation5]
  %s28 = sshll.u32 %s1, 4
  %s29 = int_to_ptr.vmem [resolvable:$true] %s28
  %31 = dma.vmem_to_smem %s29, 16, [#allocation7], [#allocation5]
  %v32 = vstv %s18
  %33 = vst [vmem:[#allocation8] sm:$0x1] %v32
  %34 = dma.done [#allocation5], 32
  %35 = sfence
  // Predicated region
  $region2: #{tpu_custom_call.1} parent=0 // pred_check
    _
  $region3: #{tpu_custom_call.1} parent=0 // pred_check_branch
    %37 = sbr.rel (0) target = $region5
  $region4: #{tpu_custom_call.1} parent=0 // pred_region
    _
  $region5: #{tpu_custom_call.1} parent=0 // pred_fallthru
    _
  // Predicated region
  $region6: #{tpu_custom_call.1} parent=0 // pred_check
    _
  $region7: #{tpu_custom_call.1} parent=0 // pred_check_branch
    %39 = sbr.rel (0) target = $region9
  $region8: #{tpu_custom_call.1} parent=0 // pred_region
    _
  $region9: #{tpu_custom_call.1} parent=0 // pred_fallthru
    _
  // Predicated region
  $region10: #{tpu_custom_call.1} parent=0 // pred_check
    _
  $region11: #{tpu_custom_call.1} parent=0 // pred_check_branch
    %41 = sbr.rel (0) target = $region13
  $region12: #{tpu_custom_call.1} parent=0 // pred_region
    _
  $region13: #{tpu_custom_call.1} parent=0 // pred_fallthru
    _
  // Predicated region
  $region14: #{tpu_custom_call.1} parent=0 // pred_check
    _
  $region15: #{tpu_custom_call.1} parent=0 // pred_check_branch
    %43 = sbr.rel (0) target = $region17
  $region16: #{tpu_custom_call.1} parent=0 // pred_region
    _
  $region17: #{tpu_custom_call.1} parent=0 // pred_fallthru
    _
  // Predicated region
  $region18: #{tpu_custom_call.1} parent=0 // pred_check
    _
  $region19: #{tpu_custom_call.1} parent=0 // pred_check_branch
    %45 = sbr.rel (0) target = $region21
  $region20: #{tpu_custom_call.1} parent=0 // pred_region
    _
  $region21: #{tpu_custom_call.1} parent=0 // pred_fallthru
    _
  // Predicated region
  $region22: #{tpu_custom_call.1} parent=0 // pred_check
    _
  $region23: #{tpu_custom_call.1} parent=0 // pred_check_branch
    %47 = sbr.rel (0) target = $region25
  $region24: #{tpu_custom_call.1} parent=0 // pred_region
    _
  $region25: #{tpu_custom_call.1} parent=0 // pred_fallthru
    _
  // Predicated region
  $region26: #{tpu_custom_call.1} parent=0 // pred_check
    _
  $region27: #{tpu_custom_call.1} parent=0 // pred_check_branch
    %49 = sbr.rel (0) target = $region29
  $region28: #{tpu_custom_call.1} parent=0 // pred_region
    _
  $region29: #{tpu_custom_call.1} parent=0 // pred_fallthru
    _
  // Predicated region
  $region30: #{tpu_custom_call.1} parent=0 // pred_check
    _
  $region31: #{tpu_custom_call.1} parent=0 // pred_check_branch
    %51 = sbr.rel (0) target = $region33
  $region32: #{tpu_custom_call.1} parent=0 // pred_region
    _
  $region33: #{tpu_custom_call.1} parent=0 // pred_fallthru
    _
  // Predicated region
  $region34: #{tpu_custom_call.1} parent=0 // pred_check
    _
  $region35: #{tpu_custom_call.1} parent=0 // pred_check_branch
    %53 = sbr.rel (0) target = $region37
  $region36: #{tpu_custom_call.1} parent=0 // pred_region
    _
  $region37: #{tpu_custom_call.1} parent=0 // pred_fallthru
    _
  // Predicated region
  $region38: #{tpu_custom_call.1} parent=0 // pred_check
    _
  $region39: #{tpu_custom_call.1} parent=0 // pred_check_branch
    %55 = sbr.rel (0) target = $region41
  $region40: #{tpu_custom_call.1} parent=0 // pred_region
    _
  $region41: #{tpu_custom_call.1} parent=0 // pred_fallthru
    _
  // Predicated region
  $region42: #{tpu_custom_call.1} parent=0 // pred_check
    _
  $region43: #{tpu_custom_call.1} parent=0 // pred_check_branch
    %57 = sbr.rel (0) target = $region45
  $region44: #{tpu_custom_call.1} parent=0 // pred_region
    _
  $region45: #{tpu_custom_call.1} parent=0 // pred_fallthru
    _
  // Predicated region
  $region46: #{tpu_custom_call.1} parent=0 // pred_check
    _
  $region47: #{tpu_custom_call.1} parent=0 // pred_check_branch
    %59 = sbr.rel (0) target = $region49
  $region48: #{tpu_custom_call.1} parent=0 // pred_region
    _
  $region49: #{tpu_custom_call.1} parent=0 // pred_fallthru
    _
  // Predicated region
  $region50: #{tpu_custom_call.1} parent=0 // pred_check
    _
  $region51: #{tpu_custom_call.1} parent=0 // pred_check_branch
    %61 = sbr.rel (0) target = $region53
  $region52: #{tpu_custom_call.1} parent=0 // pred_region
    _
  $region53: #{tpu_custom_call.1} parent=0 // pred_fallthru
    _
  // Predicated region
  $region54: #{tpu_custom_call.1} parent=0 // pred_check
    _
  $region55: #{tpu_custom_call.1} parent=0 // pred_check_branch
    %63 = sbr.rel (0) target = $region57
  $region56: #{tpu_custom_call.1} parent=0 // pred_region
    _
  $region57: #{tpu_custom_call.1} parent=0 // pred_fallthru
    _
  // Predicated region
  $region58: #{tpu_custom_call.1} parent=0 // pred_check
    _
  $region59: #{tpu_custom_call.1} parent=0 // pred_check_branch
    %65 = sbr.rel (0) target = $region61
  $region60: #{tpu_custom_call.1} parent=0 // pred_region
    _
  $region61: #{tpu_custom_call.1} parent=0 // pred_fallthru
    _
  // Predicated region
  $region62: #{tpu_custom_call.1} parent=0 // pred_check
    _
  $region63: #{tpu_custom_call.1} parent=0 // pred_check_branch
    %67 = sbr.rel (0) target = $region65
  $region64: #{tpu_custom_call.1} parent=0 // pred_region
    _
  $region65: #{tpu_custom_call.1} parent=0 // pred_fallthru
    _
  // Predicated region
  $region66: #{tpu_custom_call.1} parent=0 // pred_check
    _
  $region67: #{tpu_custom_call.1} parent=0 // pred_check_branch
    %69 = sbr.rel (0) target = $region69
  $region68: #{tpu_custom_call.1} parent=0 // pred_region
    _
  $region69: #{tpu_custom_call.1} parent=0 // pred_fallthru
    _
  %v70 = vld [vmem:[%s2] sm:$0xff]
  %v71 = vld [vmem:[%s2 + $0x8] sm:$0xff]
  %v72 = vld [vmem:[%s3] sm:$0xff]
  %v73 = vld [vmem:[%s3 + $0x8] sm:$0xff]
  %v74 = vld [vmem:[%s3 + $0x10] sm:$0xff]
  %v75 = vld [vmem:[%s3 + $0x18] sm:$0xff]
  %v76 = vld [vmem:[%s4] sm:$0xff]
  %v77 = vld [vmem:[%s4 + $0x8] sm:$0xff]
  %v78 = vld [vmem:[%s6] sm:$0x3]
  %80 = vset.pattern.permute.xlu0 0
  %81 = vperm.xlu0 %80, %v72
  %v82 = vpop.permute.xlu0 %81
  %85 = vset.pattern.permute.xlu0 0
  %86 = vperm.xlu0 %85, %v73
  %v87 = vpop.permute.xlu0 %86
  %90 = vset.pattern.permute.xlu0 0
  %91 = vperm.xlu0 %90, %v74
  %v92 = vpop.permute.xlu0 %91
  %95 = vset.pattern.permute.xlu0 0
  %96 = vperm.xlu0 %95, %v75
  %v97 = vpop.permute.xlu0 %96
  %v99 = vlaneseq
  %v100 = vshrl.u32 %v99, 7
  %v101 = vsub.s32 0, %v100
  %v102 = vrot.slane %v78, %v101
  %v103 = vmul.f32 %v82, %v102
  %v104 = vmul.f32 %v87, %v102
  %v105 = vmul.f32 %v92, %v102
  %v106 = vmul.f32 %v97, %v102
  %107 = vset.pattern.permute.xlu0 1
  %108 = vperm.xlu0 %107, %v72
  %v109 = vpop.permute.xlu0 %108
  %111 = vset.pattern.permute.xlu0 1
  %112 = vperm.xlu0 %111, %v73
  %v113 = vpop.permute.xlu0 %112
  %115 = vset.pattern.permute.xlu0 1
  %116 = vperm.xlu0 %115, %v74
  %v117 = vpop.permute.xlu0 %116
  %119 = vset.pattern.permute.xlu0 1
  %120 = vperm.xlu0 %119, %v75
  %v121 = vpop.permute.xlu0 %120
  %v123 = vlaneseq
  %v124 = vshrl.u32 %v123, 7
  %v125 = vsub.s32 1, %v124
  %v126 = vrot.slane %v78, %v125
  %v127 = vmul.f32 %v109, %v126
  %v128 = vmul.f32 %v113, %v126
  %v129 = vmul.f32 %v117, %v126
  %v130 = vmul.f32 %v121, %v126
  %v131 = vadd.f32 %v103, %v127
  %v132 = vadd.f32 %v104, %v128
  %v133 = vadd.f32 %v105, %v129
  %v134 = vadd.f32 %v106, %v130
  %v135 = vld [vmem:[%s7] sm:$0x1]
  %v137 = vlaneseq
  %v138 = vshrl.u32 %v137, 7
  %v139 = vsub.s32 0, %v138
  %v140 = vrot.slane %v135, %v139
  %v142 = vadd.f32 %v131, %v140
  %v143 = vadd.f32 %v132, %v140
  %v144 = vadd.f32 %v133, %v140
  %v145 = vadd.f32 %v134, %v140
  %v146 = vtanh.pop %v142
  %v147 = vtanh.pop %v143
  %v148 = vtanh.pop %v144
  %v149 = vtanh.pop %v145
  %v150 = vld [vmem:[%s8] sm:$0x3]
  %v151 = vld [vmem:[%s9] sm:$0x3]
  %153 = vset.pattern.permute.xlu0 0
  %154 = vperm.xlu0 %153, %v146
  %v155 = vpop.permute.xlu0 %154
  %158 = vset.pattern.permute.xlu0 0
  %159 = vperm.xlu0 %158, %v147
  %v160 = vpop.permute.xlu0 %159
  %163 = vset.pattern.permute.xlu0 0
  %164 = vperm.xlu0 %163, %v148
  %v165 = vpop.permute.xlu0 %164
  %168 = vset.pattern.permute.xlu0 0
  %169 = vperm.xlu0 %168, %v149
  %v170 = vpop.permute.xlu0 %169
  %v172 = vlaneseq
  %v173 = vshrl.u32 %v172, 7
  %v174 = vsub.s32 0, %v173
  %v175 = vrot.slane %v150, %v174
  %v176 = vsub.f32 %v155, %v175
  %v177 = vsub.f32 %v160, %v175
  %v178 = vsub.f32 %v165, %v175
  %v179 = vsub.f32 %v170, %v175
  %v180 = vmul.f32 %v176, %v176
  %v181 = vmul.f32 %v177, %v177
  %v182 = vmul.f32 %v178, %v178
  %v183 = vmul.f32 %v179, %v179
  %v184 = vlaneseq
  %v185 = vshrl.u32 %v184, 7
  %v186 = vsub.s32 0, %v185
  %v187 = vrot.slane %v151, %v186
  %v188 = vmul.f32 %v180, %v187
  %v189 = vmul.f32 %v181, %v187
  %v190 = vmul.f32 %v182, %v187
  %v191 = vmul.f32 %v183, %v187
  %v192 = vadd.f32 %v188, 0.0
  %v193 = vadd.f32 %v189, 0.0
  %v194 = vadd.f32 %v190, 0.0
  %v195 = vadd.f32 %v191, 0.0
  %196 = vset.pattern.permute.xlu0 1
  %197 = vperm.xlu0 %196, %v146
  %v198 = vpop.permute.xlu0 %197
  %200 = vset.pattern.permute.xlu0 1
  %201 = vperm.xlu0 %200, %v147
  %v202 = vpop.permute.xlu0 %201
  %204 = vset.pattern.permute.xlu0 1
  %205 = vperm.xlu0 %204, %v148
  %v206 = vpop.permute.xlu0 %205
  %208 = vset.pattern.permute.xlu0 1
  %209 = vperm.xlu0 %208, %v149
  %v210 = vpop.permute.xlu0 %209
  %v212 = vlaneseq
  %v213 = vshrl.u32 %v212, 7
  %v214 = vsub.s32 1, %v213
  %v215 = vrot.slane %v150, %v214
  %v216 = vsub.f32 %v198, %v215
  %v217 = vsub.f32 %v202, %v215
  %v218 = vsub.f32 %v206, %v215
  %v219 = vsub.f32 %v210, %v215
  %v220 = vmul.f32 %v216, %v216
  %v221 = vmul.f32 %v217, %v217
  %v222 = vmul.f32 %v218, %v218
  %v223 = vmul.f32 %v219, %v219
  %v224 = vlaneseq
  %v225 = vshrl.u32 %v224, 7
  %v226 = vsub.s32 1, %v225
  %v227 = vrot.slane %v151, %v226
  %v228 = vmul.f32 %v220, %v227
  %v229 = vmul.f32 %v221, %v227
  %v230 = vmul.f32 %v222, %v227
  %v231 = vmul.f32 %v223, %v227
  %v232 = vadd.f32 %v192, %v228
  %v233 = vadd.f32 %v193, %v229
  %v234 = vadd.f32 %v194, %v230
  %v235 = vadd.f32 %v195, %v231
  %v236 = vmul.f32 %v232, 1.442695
  %v237 = vpow.pop %v236
  %v238 = vmul.f32 %v233, 1.442695
  %v239 = vpow.pop %v238
  %v240 = vmul.f32 %v234, 1.442695
  %v241 = vpow.pop %v240
  %v242 = vmul.f32 %v235, 1.442695
  %v243 = vpow.pop %v242
  %vm244 = vcmask 23552
  %245 = vst.msk [vmem:[#allocation3] sm:$0xff] %vm244, %v237
  %246 = vst.msk [vmem:[#allocation3 + $0x8] sm:$0xff] %vm244, %v239
  %247 = vst.msk [vmem:[#allocation3 + $0x10] sm:$0xff] %vm244, %v241
  %248 = vst.msk [vmem:[#allocation3 + $0x18] sm:$0xff] %vm244, %v243
  %v249 = vld [vmem:[%s10] sm:$0xff]
  %v250 = vld [vmem:[%s10 + $0x8] sm:$0xff]
  %v251 = vld [vmem:[%s10 + $0x10] sm:$0xff]
  %v252 = vld [vmem:[%s10 + $0x18] sm:$0xff]
  %vm253 = vcmask 261120
  %v255 = vsel %vm253, %v70, 0
  %v258 = vsel %vm253, %v71, 0
  %260 = vmatprep.subr.mxu0 0.0
  %261 = vmatpush1.msra.mxu0 %v249
  %262 = vmatprep.subr.mxu0 0.0
  %263 = vmatpush1.msra.mxu0 %v250
  %264 = vmatprep.subr.mxu0 0.0
  %265 = vmatpush1.msra.mxu0 %v251
  %266 = vmatprep.subr.mxu0 0.0
  %267 = vmatpush1.msra.mxu0 %v252
  %268 = vmatprep.subr.mxu0 0.0
  %269 = vmatpush1.msra.mxu0 0.0
  %270 = vmatprep.subr.mxu0 0.0
  %271 = vmatpush1.msra.mxu0 0.0
  %272 = vmatprep.subr.mxu0 0.0
  %273 = vmatpush1.msra.mxu0 0.0
  %274 = vmatprep.subr.mxu0 0.0
  %275 = vmatpush1.msra.mxu0 0.0
  %276 = vmatprep.subr.mxu0 0.0
  %277 = vmatpush1.msra.mxu0 0.0
  %278 = vmatprep.subr.mxu0 0.0
  %279 = vmatpush1.msra.mxu0 0.0
  %280 = vmatprep.subr.mxu0 0.0
  %281 = vmatpush1.msra.mxu0 0.0
  %282 = vmatprep.subr.mxu0 0.0
  %283 = vmatpush1.msra.mxu0 0.0
  %284 = vmatprep.subr.mxu0 0.0
  %285 = vmatpush1.msra.mxu0 0.0
  %286 = vmatprep.subr.mxu0 0.0
  %287 = vmatpush1.msra.mxu0 0.0
  %288 = vmatprep.subr.mxu0 0.0
  %289 = vmatpush1.msra.mxu0 0.0
  %290 = vmatprep.subr.mxu0 0.0
  %291 = vmatpush1.msra.mxu0 0.0
  %292 = vmatprep.subr.mxu0 0.0
  %293 = vmatpush1.msra.mxu0 0.0
  %294 = vmatprep.subr.mxu0 0.0
  %295 = vmatpush1.msra.mxu0 0.0
  %296 = vmatprep.subr.mxu0 0.0
  %297 = vmatpush1.msra.mxu0 0.0
  %298 = vmatprep.subr.mxu0 0.0
  %299 = vmatpush1.msra.mxu0 0.0
  %300 = vmatprep.subr.mxu0 0.0
  %301 = vmatpush1.msra.mxu0 0.0
  %302 = vmatprep.subr.mxu0 0.0
  %303 = vmatpush1.msra.mxu0 0.0
  %304 = vmatprep.subr.mxu0 0.0
  %305 = vmatpush1.msra.mxu0 0.0
  %306 = vmatprep.subr.mxu0 0.0
  %307 = vmatpush1.msra.mxu0 0.0
  %308 = vmatprep.subr.mxu0 0.0
  %309 = vmatpush1.msra.mxu0 0.0
  %310 = vmatprep.subr.mxu0 0.0
  %311 = vmatpush1.msra.mxu0 0.0
  %312 = vmatprep.subr.mxu0 0.0
  %313 = vmatpush1.msra.mxu0 0.0
  %314 = vmatprep.subr.mxu0 0.0
  %315 = vmatpush1.msra.mxu0 0.0
  %316 = vmatprep.subr.mxu0 0.0
  %317 = vmatpush1.msra.mxu0 0.0
  %318 = vmatprep.subr.mxu0 0.0
  %319 = vmatpush1.msra.mxu0 0.0
  %320 = vmatprep.subr.mxu0 0.0
  %321 = vmatpush1.msra.mxu0 0.0
  %322 = vmatprep.subr.mxu0 0.0
  %323 = vmatpush1.msra.mxu0 0.0
  %324 = vmatprep.mubr.f32.mxu0 0.0
  %325 = vmatmul.mubr.f32.gmra.mrb[0].mxu0 %v255
  %v326 = vpop.f32.mrb[0].mxu0
  %v327 = vadd.f32 0.0, %v326
  %v328 = vpop.f32.mrb[0].mxu0
  %329 = vmatprep.mubr.f32.mxu0 0.0
  %330 = vmatmul.mubr.f32.gmra.mrb[0].mxu0 %v258
  %v331 = vpop.f32.mrb[0].mxu0
  %v332 = vadd.f32 0.0, %v331
  %v333 = vpop.f32.mrb[0].mxu0
  %334 = vdwg.mxu0
  %vm335 = vcmask 785408
  %336 = vst.msk [vmem:[#allocation2] sm:$0xff] %vm335, %v327
  %337 = vst.msk [vmem:[#allocation2 + $0x8] sm:$0xff] %vm335, %v332
  %338 = vst.msk [vmem:[#allocation4] sm:$0xff] %vm253, 0.0
  %339 = vst.msk [vmem:[#allocation4 + $0x8] sm:$0xff] %vm253, 0.0
  loop: start=0, step=1, limit=32
  $region70: #{tpu_custom_call.1} parent=0 // loop_pre_header
    _
  $region71: #{tpu_custom_call.1} parent=0 // loop_header
    %s341 = sphi 0, %s345
    %p342 = scmp.ge.s32.totalorder %s341, 32
  $region72: #{tpu_custom_call.1} parent=0 // loop_header_branch
    %344 = sbr.rel (%p342) target = $region76
  $region73: #{tpu_custom_call.1} parent=0 // loop_body
    %s346 = sld [smem:[#allocation6 + %s341]]
    %s347 = sld [smem:[#allocation7 + %s341]]
    %s348 = scalar_lea.vmem [#allocation2], %s346
    %v349 = vld [vmem:[%s348] sm:$0x1]
    %s350 = scalar_lea.vmem [#allocation3], %s341
    %v351 = vld [vmem:[%s350] sm:$0x1]
    %353 = vset.pattern.permute.xlu0 0
    %354 = vperm.xlu0 %353, %v351
    %v355 = vpop.permute.xlu0 %354
    %v357 = vmul.f32 %v349, %v355
    %358 = vset.pattern.permute.xlu0 1
    %359 = vperm.xlu0 %358, %v351
    %v360 = vpop.permute.xlu0 %359
    %v362 = vmul.f32 %v349, %v360
    %364 = vrot.lane.b32.xlu0 %v362, 96
    %v365 = vpop.permute.xlu0 %364
    %v367 = vadd.f32 %v357, %v365
    %368 = vset.pattern.permute.xlu0 2
    %369 = vperm.xlu0 %368, %v351
    %v370 = vpop.permute.xlu0 %369
    %v372 = vmul.f32 %v349, %v370
    %374 = vrot.lane.b32.xlu0 %v372, 64
    %v375 = vpop.permute.xlu0 %374
    %v377 = vadd.f32 %v367, %v375
    %s378 = scalar_lea.vmem [#allocation4], %s347
    %v379 = vld [vmem:[%s378] sm:$0x1]
    %v380 = vadd.f32 %v379, %v377
    %vm381 = vcmask 253952
    %382 = vst.msk [vmem:[%s378] sm:$0x1] %vm381, %v380
  $region74: #{tpu_custom_call.1} parent=0 // loop_footer
    %s345 = sadd.s32 1, %s341
  $region75: #{tpu_custom_call.1} parent=0 // loop_footer_branch
    %340 = sbr.rel target = $region71
  $region76: #{tpu_custom_call.1} parent=0 // loop_exit
    _
  %v383 = vld [vmem:[#allocation4] sm:$0xff]
  %v384 = vld [vmem:[#allocation4 + $0x8] sm:$0xff]
  %386 = vset.pattern.permute.xlu0 0
  %387 = vperm.xlu0 %386, %v76
  %v388 = vpop.permute.xlu0 %387
  %391 = vset.pattern.permute.xlu0 0
  %392 = vperm.xlu0 %391, %v77
  %v393 = vpop.permute.xlu0 %392
  %v395 = vmul.f32 %v383, %v388
  %v396 = vmul.f32 %v384, %v393
  %v397 = vsel %vm253, %v395, 0.0
  %v398 = vsel %vm253, %v396, 0.0
  %v399 = vadd.f32 %v397, %v398
  %v400 = vrot.slane %v399, 4
  %v401 = vadd.f32 %v399, %v400
  %v402 = vrot.slane %v401, 2
  %v403 = vadd.f32 %v401, %v402
  %v404 = vrot.slane %v403, 1
  %v405 = vadd.f32 %v403, %v404
  %v406 = vrcp.pop 16.0
  %v407 = vmul.f32 %v405, %v406
  %v408 = vmul.f32 %v395, %v395
  %v409 = vmul.f32 %v396, %v396
  %v410 = vsel %vm253, %v408, 0.0
  %v411 = vsel %vm253, %v409, 0.0
  %v412 = vadd.f32 %v410, %v411
  %v413 = vrot.slane %v412, 4
  %v414 = vadd.f32 %v412, %v413
  %v415 = vrot.slane %v414, 2
  %v416 = vadd.f32 %v414, %v415
  %v417 = vrot.slane %v416, 1
  %v418 = vadd.f32 %v416, %v417
  %v419 = vmul.f32 %v418, %v406
  %v420 = vmul.f32 %v407, %v407
  %v421 = vsub.f32 %v419, %v420
  %v422 = vsub.f32 %v395, %v407
  %v423 = vsub.f32 %v396, %v407
  %v424 = vadd.f32 %v421, 1e-05
  %v425 = vrsqrt.pop %v424
  %v426 = vmul.f32 %v422, %v425
  %v427 = vmul.f32 %v423, %v425
  %v428 = vld [vmem:[%s11] sm:$0x1]
  %v430 = vlaneseq
  %v431 = vshrl.u32 %v430, 7
  %v432 = vsub.s32 0, %v431
  %v433 = vrot.slane %v428, %v432
  %v435 = vmul.f32 %v426, %v433
  %v436 = vmul.f32 %v427, %v433
  %v437 = vld [vmem:[%s12] sm:$0x1]
  %v439 = vlaneseq
  %v440 = vshrl.u32 %v439, 7
  %v441 = vsub.s32 0, %v440
  %v442 = vrot.slane %v437, %v441
  %v444 = vadd.f32 %v435, %v442
  %v445 = vadd.f32 %v436, %v442
  %v446 = vmax.f32 %v444, 0.0
  %v447 = vmax.f32 %v445, 0.0
  %v448 = vadd.f32 %v446, %v70
  %v449 = vadd.f32 %v447, %v71
  %s450 = scalar_lea.vmem %s6, 2
  %v451 = vld [vmem:[%s450] sm:$0x3]
  %v452 = vlaneseq
  %v453 = vshrl.u32 %v452, 7
  %v454 = vsub.s32 0, %v453
  %v455 = vrot.slane %v451, %v454
  %v456 = vmul.f32 %v82, %v455
  %v457 = vmul.f32 %v87, %v455
  %v458 = vmul.f32 %v92, %v455
  %v459 = vmul.f32 %v97, %v455
  %v460 = vlaneseq
  %v461 = vshrl.u32 %v460, 7
  %v462 = vsub.s32 1, %v461
  %v463 = vrot.slane %v451, %v462
  %v464 = vmul.f32 %v109, %v463
  %v465 = vmul.f32 %v113, %v463
  %v466 = vmul.f32 %v117, %v463
  %v467 = vmul.f32 %v121, %v463
  %v468 = vadd.f32 %v456, %v464
  %v469 = vadd.f32 %v457, %v465
  %v470 = vadd.f32 %v458, %v466
  %v471 = vadd.f32 %v459, %v467
  %s472 = scalar_lea.vmem %s7, 1
  %v473 = vld [vmem:[%s472] sm:$0x1]
  %v475 = vlaneseq
  %v476 = vshrl.u32 %v475, 7
  %v477 = vsub.s32 0, %v476
  %v478 = vrot.slane %v473, %v477
  %v480 = vadd.f32 %v468, %v478
  %v481 = vadd.f32 %v469, %v478
  %v482 = vadd.f32 %v470, %v478
  %v483 = vadd.f32 %v471, %v478
  %v484 = vtanh.pop %v480
  %v485 = vtanh.pop %v481
  %v486 = vtanh.pop %v482
  %v487 = vtanh.pop %v483
  %s488 = scalar_lea.vmem %s8, 2
  %v489 = vld [vmem:[%s488] sm:$0x3]
  %s490 = scalar_lea.vmem %s9, 2
  %v491 = vld [vmem:[%s490] sm:$0x3]
  %493 = vset.pattern.permute.xlu0 0
  %494 = vperm.xlu0 %493, %v484
  %v495 = vpop.permute.xlu0 %494
  %498 = vset.pattern.permute.xlu0 0
  %499 = vperm.xlu0 %498, %v485
  %v500 = vpop.permute.xlu0 %499
  %503 = vset.pattern.permute.xlu0 0
  %504 = vperm.xlu0 %503, %v486
  %v505 = vpop.permute.xlu0 %504
  %508 = vset.pattern.permute.xlu0 0
  %509 = vperm.xlu0 %508, %v487
  %v510 = vpop.permute.xlu0 %509
  %v512 = vlaneseq
  %v513 = vshrl.u32 %v512, 7
  %v514 = vsub.s32 0, %v513
  %v515 = vrot.slane %v489, %v514
  %v516 = vsub.f32 %v495, %v515
  %v517 = vsub.f32 %v500, %v515
  %v518 = vsub.f32 %v505, %v515
  %v519 = vsub.f32 %v510, %v515
  %v520 = vmul.f32 %v516, %v516
  %v521 = vmul.f32 %v517, %v517
  %v522 = vmul.f32 %v518, %v518
  %v523 = vmul.f32 %v519, %v519
  %v524 = vlaneseq
  %v525 = vshrl.u32 %v524, 7
  %v526 = vsub.s32 0, %v525
  %v527 = vrot.slane %v491, %v526
  %v528 = vmul.f32 %v520, %v527
  %v529 = vmul.f32 %v521, %v527
  %v530 = vmul.f32 %v522, %v527
  %v531 = vmul.f32 %v523, %v527
  %v532 = vadd.f32 %v528, 0.0
  %v533 = vadd.f32 %v529, 0.0
  %v534 = vadd.f32 %v530, 0.0
  %v535 = vadd.f32 %v531, 0.0
  %536 = vset.pattern.permute.xlu0 1
  %537 = vperm.xlu0 %536, %v484
  %v538 = vpop.permute.xlu0 %537
  %540 = vset.pattern.permute.xlu0 1
  %541 = vperm.xlu0 %540, %v485
  %v542 = vpop.permute.xlu0 %541
  %544 = vset.pattern.permute.xlu0 1
  %545 = vperm.xlu0 %544, %v486
  %v546 = vpop.permute.xlu0 %545
  %548 = vset.pattern.permute.xlu0 1
  %549 = vperm.xlu0 %548, %v487
  %v550 = vpop.permute.xlu0 %549
  %v552 = vlaneseq
  %v553 = vshrl.u32 %v552, 7
  %v554 = vsub.s32 1, %v553
  %v555 = vrot.slane %v489, %v554
  %v556 = vsub.f32 %v538, %v555
  %v557 = vsub.f32 %v542, %v555
  %v558 = vsub.f32 %v546, %v555
  %v559 = vsub.f32 %v550, %v555
  %v560 = vmul.f32 %v556, %v556
  %v561 = vmul.f32 %v557, %v557
  %v562 = vmul.f32 %v558, %v558
  %v563 = vmul.f32 %v559, %v559
  %v564 = vlaneseq
  %v565 = vshrl.u32 %v564, 7
  %v566 = vsub.s32 1, %v565
  %v567 = vrot.slane %v491, %v566
  %v568 = vmul.f32 %v560, %v567
  %v569 = vmul.f32 %v561, %v567
  %v570 = vmul.f32 %v562, %v567
  %v571 = vmul.f32 %v563, %v567
  %v572 = vadd.f32 %v532, %v568
  %v573 = vadd.f32 %v533, %v569
  %v574 = vadd.f32 %v534, %v570
  %v575 = vadd.f32 %v535, %v571
  %v576 = vmul.f32 %v572, 1.442695
  %v577 = vpow.pop %v576
  %v578 = vmul.f32 %v573, 1.442695
  %v579 = vpow.pop %v578
  %v580 = vmul.f32 %v574, 1.442695
  %v581 = vpow.pop %v580
  %v582 = vmul.f32 %v575, 1.442695
  %v583 = vpow.pop %v582
  %584 = vst.msk [vmem:[#allocation3] sm:$0xff] %vm244, %v577
  %585 = vst.msk [vmem:[#allocation3 + $0x8] sm:$0xff] %vm244, %v579
  %586 = vst.msk [vmem:[#allocation3 + $0x10] sm:$0xff] %vm244, %v581
  %587 = vst.msk [vmem:[#allocation3 + $0x18] sm:$0xff] %vm244, %v583
  %s588 = scalar_lea.vmem %s10, 32
  %v589 = vld [vmem:[%s588] sm:$0xff]
  %v590 = vld [vmem:[%s588 + $0x8] sm:$0xff]
  %v591 = vld [vmem:[%s588 + $0x10] sm:$0xff]
  %v592 = vld [vmem:[%s588 + $0x18] sm:$0xff]
  %v594 = vsel %vm253, %v448, 0
  %v597 = vsel %vm253, %v449, 0
  %599 = vmatprep.subr.mxu0 0.0
  %600 = vmatpush1.msra.mxu0 %v589
  %601 = vmatprep.subr.mxu0 0.0
  %602 = vmatpush1.msra.mxu0 %v590
  %603 = vmatprep.subr.mxu0 0.0
  %604 = vmatpush1.msra.mxu0 %v591
  %605 = vmatprep.subr.mxu0 0.0
  %606 = vmatpush1.msra.mxu0 %v592
  %607 = vmatprep.subr.mxu0 0.0
  %608 = vmatpush1.msra.mxu0 0.0
  %609 = vmatprep.subr.mxu0 0.0
  %610 = vmatpush1.msra.mxu0 0.0
  %611 = vmatprep.subr.mxu0 0.0
  %612 = vmatpush1.msra.mxu0 0.0
  %613 = vmatprep.subr.mxu0 0.0
  %614 = vmatpush1.msra.mxu0 0.0
  %615 = vmatprep.subr.mxu0 0.0
  %616 = vmatpush1.msra.mxu0 0.0
  %617 = vmatprep.subr.mxu0 0.0
  %618 = vmatpush1.msra.mxu0 0.0
  %619 = vmatprep.subr.mxu0 0.0
  %620 = vmatpush1.msra.mxu0 0.0
  %621 = vmatprep.subr.mxu0 0.0
  %622 = vmatpush1.msra.mxu0 0.0
  %623 = vmatprep.subr.mxu0 0.0
  %624 = vmatpush1.msra.mxu0 0.0
  %625 = vmatprep.subr.mxu0 0.0
  %626 = vmatpush1.msra.mxu0 0.0
  %627 = vmatprep.subr.mxu0 0.0
  %628 = vmatpush1.msra.mxu0 0.0
  %629 = vmatprep.subr.mxu0 0.0
  %630 = vmatpush1.msra.mxu0 0.0
  %631 = vmatprep.subr.mxu0 0.0
  %632 = vmatpush1.msra.mxu0 0.0
  %633 = vmatprep.subr.mxu0 0.0
  %634 = vmatpush1.msra.mxu0 0.0
  %635 = vmatprep.subr.mxu0 0.0
  %636 = vmatpush1.msra.mxu0 0.0
  %637 = vmatprep.subr.mxu0 0.0
  %638 = vmatpush1.msra.mxu0 0.0
  %639 = vmatprep.subr.mxu0 0.0
  %640 = vmatpush1.msra.mxu0 0.0
  %641 = vmatprep.subr.mxu0 0.0
  %642 = vmatpush1.msra.mxu0 0.0
  %643 = vmatprep.subr.mxu0 0.0
  %644 = vmatpush1.msra.mxu0 0.0
  %645 = vmatprep.subr.mxu0 0.0
  %646 = vmatpush1.msra.mxu0 0.0
  %647 = vmatprep.subr.mxu0 0.0
  %648 = vmatpush1.msra.mxu0 0.0
  %649 = vmatprep.subr.mxu0 0.0
  %650 = vmatpush1.msra.mxu0 0.0
  %651 = vmatprep.subr.mxu0 0.0
  %652 = vmatpush1.msra.mxu0 0.0
  %653 = vmatprep.subr.mxu0 0.0
  %654 = vmatpush1.msra.mxu0 0.0
  %655 = vmatprep.subr.mxu0 0.0
  %656 = vmatpush1.msra.mxu0 0.0
  %657 = vmatprep.subr.mxu0 0.0
  %658 = vmatpush1.msra.mxu0 0.0
  %659 = vmatprep.subr.mxu0 0.0
  %660 = vmatpush1.msra.mxu0 0.0
  %661 = vmatprep.subr.mxu0 0.0
  %662 = vmatpush1.msra.mxu0 0.0
  %663 = vmatprep.mubr.f32.mxu0 0.0
  %664 = vmatmul.mubr.f32.gmra.mrb[0].mxu0 %v594
  %v665 = vpop.f32.mrb[0].mxu0
  %v666 = vadd.f32 0.0, %v665
  %v667 = vpop.f32.mrb[0].mxu0
  %668 = vmatprep.mubr.f32.mxu0 0.0
  %669 = vmatmul.mubr.f32.gmra.mrb[0].mxu0 %v597
  %v670 = vpop.f32.mrb[0].mxu0
  %v671 = vadd.f32 0.0, %v670
  %v672 = vpop.f32.mrb[0].mxu0
  %673 = vdwg.mxu0
  %674 = vst.msk [vmem:[#allocation2] sm:$0xff] %vm335, %v666
  %675 = vst.msk [vmem:[#allocation2 + $0x8] sm:$0xff] %vm335, %v671
  %676 = vst.msk [vmem:[#allocation4] sm:$0xff] %vm253, 0.0
  %677 = vst.msk [vmem:[#allocation4 + $0x8] sm:$0xff] %vm253, 0.0
  loop: start=0, step=1, limit=32
  $region77: #{tpu_custom_call.1} parent=0 // loop_pre_header
    _
  $region78: #{tpu_custom_call.1} parent=0 // loop_header
    %s679 = sphi 0, %s683
    %p680 = scmp.ge.s32.totalorder %s679, 32
  $region79: #{tpu_custom_call.1} parent=0 // loop_header_branch
    %682 = sbr.rel (%p680) target = $region83
  $region80: #{tpu_custom_call.1} parent=0 // loop_body
    %s684 = sld [smem:[#allocation6 + %s679]]
    %s685 = sld [smem:[#allocation7 + %s679]]
    %s686 = scalar_lea.vmem [#allocation2], %s684
    %v687 = vld [vmem:[%s686] sm:$0x1]
    %s688 = scalar_lea.vmem [#allocation3], %s679
    %v689 = vld [vmem:[%s688] sm:$0x1]
    %691 = vset.pattern.permute.xlu0 0
    %692 = vperm.xlu0 %691, %v689
    %v693 = vpop.permute.xlu0 %692
    %v695 = vmul.f32 %v687, %v693
    %696 = vset.pattern.permute.xlu0 1
    %697 = vperm.xlu0 %696, %v689
    %v698 = vpop.permute.xlu0 %697
    %v700 = vmul.f32 %v687, %v698
    %702 = vrot.lane.b32.xlu0 %v700, 96
    %v703 = vpop.permute.xlu0 %702
    %v705 = vadd.f32 %v695, %v703
    %706 = vset.pattern.permute.xlu0 2
    %707 = vperm.xlu0 %706, %v689
    %v708 = vpop.permute.xlu0 %707
    %v710 = vmul.f32 %v687, %v708
    %712 = vrot.lane.b32.xlu0 %v710, 64
    %v713 = vpop.permute.xlu0 %712
    %v715 = vadd.f32 %v705, %v713
    %s716 = scalar_lea.vmem [#allocation4], %s685
    %v717 = vld [vmem:[%s716] sm:$0x1]
    %v718 = vadd.f32 %v717, %v715
    %vm719 = vcmask 253952
    %720 = vst.msk [vmem:[%s716] sm:$0x1] %vm719, %v718
  $region81: #{tpu_custom_call.1} parent=0 // loop_footer
    %s683 = sadd.s32 1, %s679
  $region82: #{tpu_custom_call.1} parent=0 // loop_footer_branch
    %678 = sbr.rel target = $region78
  $region83: #{tpu_custom_call.1} parent=0 // loop_exit
    _
  %v721 = vld [vmem:[#allocation4] sm:$0xff]
  %v722 = vld [vmem:[#allocation4 + $0x8] sm:$0xff]
  %v723 = vmul.f32 %v721, %v388
  %v724 = vmul.f32 %v722, %v393
  %v725 = vsel %vm253, %v723, 0.0
  %v726 = vsel %vm253, %v724, 0.0
  %v727 = vadd.f32 %v725, %v726
  %v728 = vrot.slane %v727, 4
  %v729 = vadd.f32 %v727, %v728
  %v730 = vrot.slane %v729, 2
  %v731 = vadd.f32 %v729, %v730
  %v732 = vrot.slane %v731, 1
  %v733 = vadd.f32 %v731, %v732
  %v734 = vmul.f32 %v733, %v406
  %v735 = vmul.f32 %v723, %v723
  %v736 = vmul.f32 %v724, %v724
  %v737 = vsel %vm253, %v735, 0.0
  %v738 = vsel %vm253, %v736, 0.0
  %v739 = vadd.f32 %v737, %v738
  %v740 = vrot.slane %v739, 4
  %v741 = vadd.f32 %v739, %v740
  %v742 = vrot.slane %v741, 2
  %v743 = vadd.f32 %v741, %v742
  %v744 = vrot.slane %v743, 1
  %v745 = vadd.f32 %v743, %v744
  %v746 = vmul.f32 %v745, %v406
  %v747 = vmul.f32 %v734, %v734
  %v748 = vsub.f32 %v746, %v747
  %v749 = vsub.f32 %v723, %v734
  %v750 = vsub.f32 %v724, %v734
  %v751 = vadd.f32 %v748, 1e-05
  %v752 = vrsqrt.pop %v751
  %v753 = vmul.f32 %v749, %v752
  %v754 = vmul.f32 %v750, %v752
  %s755 = scalar_lea.vmem %s11, 1
  %v756 = vld [vmem:[%s755] sm:$0x1]
  %v758 = vlaneseq
  %v759 = vshrl.u32 %v758, 7
  %v760 = vsub.s32 0, %v759
  %v761 = vrot.slane %v756, %v760
  %v763 = vmul.f32 %v753, %v761
  %v764 = vmul.f32 %v754, %v761
  %s765 = scalar_lea.vmem %s12, 1
  %v766 = vld [vmem:[%s765] sm:$0x1]
  %v768 = vlaneseq
  %v769 = vshrl.u32 %v768, 7
  %v770 = vsub.s32 0, %v769
  %v771 = vrot.slane %v766, %v770
  %v773 = vadd.f32 %v763, %v771
  %v774 = vadd.f32 %v764, %v771
  %v775 = vmax.f32 %v773, 0.0
  %v776 = vmax.f32 %v774, 0.0
  %v777 = vadd.f32 %v775, %v448
  %v778 = vadd.f32 %v776, %v449
  %s779 = scalar_lea.vmem %s6, 4
  %v780 = vld [vmem:[%s779] sm:$0x3]
  %v781 = vlaneseq
  %v782 = vshrl.u32 %v781, 7
  %v783 = vsub.s32 0, %v782
  %v784 = vrot.slane %v780, %v783
  %v785 = vmul.f32 %v82, %v784
  %v786 = vmul.f32 %v87, %v784
  %v787 = vmul.f32 %v92, %v784
  %v788 = vmul.f32 %v97, %v784
  %v789 = vlaneseq
  %v790 = vshrl.u32 %v789, 7
  %v791 = vsub.s32 1, %v790
  %v792 = vrot.slane %v780, %v791
  %v793 = vmul.f32 %v109, %v792
  %v794 = vmul.f32 %v113, %v792
  %v795 = vmul.f32 %v117, %v792
  %v796 = vmul.f32 %v121, %v792
  %v797 = vadd.f32 %v785, %v793
  %v798 = vadd.f32 %v786, %v794
  %v799 = vadd.f32 %v787, %v795
  %v800 = vadd.f32 %v788, %v796
  %s801 = scalar_lea.vmem %s7, 2
  %v802 = vld [vmem:[%s801] sm:$0x1]
  %v804 = vlaneseq
  %v805 = vshrl.u32 %v804, 7
  %v806 = vsub.s32 0, %v805
  %v807 = vrot.slane %v802, %v806
  %v809 = vadd.f32 %v797, %v807
  %v810 = vadd.f32 %v798, %v807
  %v811 = vadd.f32 %v799, %v807
  %v812 = vadd.f32 %v800, %v807
  %v813 = vtanh.pop %v809
  %v814 = vtanh.pop %v810
  %v815 = vtanh.pop %v811
  %v816 = vtanh.pop %v812
  %s817 = scalar_lea.vmem %s8, 4
  %v818 = vld [vmem:[%s817] sm:$0x3]
  %s819 = scalar_lea.vmem %s9, 4
  %v820 = vld [vmem:[%s819] sm:$0x3]
  %822 = vset.pattern.permute.xlu0 0
  %823 = vperm.xlu0 %822, %v813
  %v824 = vpop.permute.xlu0 %823
  %827 = vset.pattern.permute.xlu0 0
  %828 = vperm.xlu0 %827, %v814
  %v829 = vpop.permute.xlu0 %828
  %832 = vset.pattern.permute.xlu0 0
  %833 = vperm.xlu0 %832, %v815
  %v834 = vpop.permute.xlu0 %833
  %837 = vset.pattern.permute.xlu0 0
  %838 = vperm.xlu0 %837, %v816
  %v839 = vpop.permute.xlu0 %838
  %v841 = vlaneseq
  %v842 = vshrl.u32 %v841, 7
  %v843 = vsub.s32 0, %v842
  %v844 = vrot.slane %v818, %v843
  %v845 = vsub.f32 %v824, %v844
  %v846 = vsub.f32 %v829, %v844
  %v847 = vsub.f32 %v834, %v844
  %v848 = vsub.f32 %v839, %v844
  %v849 = vmul.f32 %v845, %v845
  %v850 = vmul.f32 %v846, %v846
  %v851 = vmul.f32 %v847, %v847
  %v852 = vmul.f32 %v848, %v848
  %v853 = vlaneseq
  %v854 = vshrl.u32 %v853, 7
  %v855 = vsub.s32 0, %v854
  %v856 = vrot.slane %v820, %v855
  %v857 = vmul.f32 %v849, %v856
  %v858 = vmul.f32 %v850, %v856
  %v859 = vmul.f32 %v851, %v856
  %v860 = vmul.f32 %v852, %v856
  %v861 = vadd.f32 %v857, 0.0
  %v862 = vadd.f32 %v858, 0.0
  %v863 = vadd.f32 %v859, 0.0
  %v864 = vadd.f32 %v860, 0.0
  %865 = vset.pattern.permute.xlu0 1
  %866 = vperm.xlu0 %865, %v813
  %v867 = vpop.permute.xlu0 %866
  %869 = vset.pattern.permute.xlu0 1
  %870 = vperm.xlu0 %869, %v814
  %v871 = vpop.permute.xlu0 %870
  %873 = vset.pattern.permute.xlu0 1
  %874 = vperm.xlu0 %873, %v815
  %v875 = vpop.permute.xlu0 %874
  %877 = vset.pattern.permute.xlu0 1
  %878 = vperm.xlu0 %877, %v816
  %v879 = vpop.permute.xlu0 %878
  %v881 = vlaneseq
  %v882 = vshrl.u32 %v881, 7
  %v883 = vsub.s32 1, %v882
  %v884 = vrot.slane %v818, %v883
  %v885 = vsub.f32 %v867, %v884
  %v886 = vsub.f32 %v871, %v884
  %v887 = vsub.f32 %v875, %v884
  %v888 = vsub.f32 %v879, %v884
  %v889 = vmul.f32 %v885, %v885
  %v890 = vmul.f32 %v886, %v886
  %v891 = vmul.f32 %v887, %v887
  %v892 = vmul.f32 %v888, %v888
  %v893 = vlaneseq
  %v894 = vshrl.u32 %v893, 7
  %v895 = vsub.s32 1, %v894
  %v896 = vrot.slane %v820, %v895
  %v897 = vmul.f32 %v889, %v896
  %v898 = vmul.f32 %v890, %v896
  %v899 = vmul.f32 %v891, %v896
  %v900 = vmul.f32 %v892, %v896
  %v901 = vadd.f32 %v861, %v897
  %v902 = vadd.f32 %v862, %v898
  %v903 = vadd.f32 %v863, %v899
  %v904 = vadd.f32 %v864, %v900
  %v905 = vmul.f32 %v901, 1.442695
  %v906 = vpow.pop %v905
  %v907 = vmul.f32 %v902, 1.442695
  %v908 = vpow.pop %v907
  %v909 = vmul.f32 %v903, 1.442695
  %v910 = vpow.pop %v909
  %v911 = vmul.f32 %v904, 1.442695
  %v912 = vpow.pop %v911
  %913 = vst.msk [vmem:[#allocation3] sm:$0xff] %vm244, %v906
  %914 = vst.msk [vmem:[#allocation3 + $0x8] sm:$0xff] %vm244, %v908
  %915 = vst.msk [vmem:[#allocation3 + $0x10] sm:$0xff] %vm244, %v910
  %916 = vst.msk [vmem:[#allocation3 + $0x18] sm:$0xff] %vm244, %v912
  %s917 = scalar_lea.vmem %s10, 64
  %v918 = vld [vmem:[%s917] sm:$0xff]
  %v919 = vld [vmem:[%s917 + $0x8] sm:$0xff]
  %v920 = vld [vmem:[%s917 + $0x10] sm:$0xff]
  %v921 = vld [vmem:[%s917 + $0x18] sm:$0xff]
  %v923 = vsel %vm253, %v777, 0
  %v926 = vsel %vm253, %v778, 0
  %928 = vmatprep.subr.mxu0 0.0
  %929 = vmatpush1.msra.mxu0 %v918
  %930 = vmatprep.subr.mxu0 0.0
  %931 = vmatpush1.msra.mxu0 %v919
  %932 = vmatprep.subr.mxu0 0.0
  %933 = vmatpush1.msra.mxu0 %v920
  %934 = vmatprep.subr.mxu0 0.0
  %935 = vmatpush1.msra.mxu0 %v921
  %936 = vmatprep.subr.mxu0 0.0
  %937 = vmatpush1.msra.mxu0 0.0
  %938 = vmatprep.subr.mxu0 0.0
  %939 = vmatpush1.msra.mxu0 0.0
  %940 = vmatprep.subr.mxu0 0.0
  %941 = vmatpush1.msra.mxu0 0.0
  %942 = vmatprep.subr.mxu0 0.0
  %943 = vmatpush1.msra.mxu0 0.0
  %944 = vmatprep.subr.mxu0 0.0
  %945 = vmatpush1.msra.mxu0 0.0
  %946 = vmatprep.subr.mxu0 0.0
  %947 = vmatpush1.msra.mxu0 0.0
  %948 = vmatprep.subr.mxu0 0.0
  %949 = vmatpush1.msra.mxu0 0.0
  %950 = vmatprep.subr.mxu0 0.0
  %951 = vmatpush1.msra.mxu0 0.0
  %952 = vmatprep.subr.mxu0 0.0
  %953 = vmatpush1.msra.mxu0 0.0
  %954 = vmatprep.subr.mxu0 0.0
  %955 = vmatpush1.msra.mxu0 0.0
  %956 = vmatprep.subr.mxu0 0.0
  %957 = vmatpush1.msra.mxu0 0.0
  %958 = vmatprep.subr.mxu0 0.0
  %959 = vmatpush1.msra.mxu0 0.0
  %960 = vmatprep.subr.mxu0 0.0
  %961 = vmatpush1.msra.mxu0 0.0
  %962 = vmatprep.subr.mxu0 0.0
  %963 = vmatpush1.msra.mxu0 0.0
  %964 = vmatprep.subr.mxu0 0.0
  %965 = vmatpush1.msra.mxu0 0.0
  %966 = vmatprep.subr.mxu0 0.0
  %967 = vmatpush1.msra.mxu0 0.0
  %968 = vmatprep.subr.mxu0 0.0
  %969 = vmatpush1.msra.mxu0 0.0
  %970 = vmatprep.subr.mxu0 0.0
  %971 = vmatpush1.msra.mxu0 0.0
  %972 = vmatprep.subr.mxu0 0.0
  %973 = vmatpush1.msra.mxu0 0.0
  %974 = vmatprep.subr.mxu0 0.0
  %975 = vmatpush1.msra.mxu0 0.0
  %976 = vmatprep.subr.mxu0 0.0
  %977 = vmatpush1.msra.mxu0 0.0
  %978 = vmatprep.subr.mxu0 0.0
  %979 = vmatpush1.msra.mxu0 0.0
  %980 = vmatprep.subr.mxu0 0.0
  %981 = vmatpush1.msra.mxu0 0.0
  %982 = vmatprep.subr.mxu0 0.0
  %983 = vmatpush1.msra.mxu0 0.0
  %984 = vmatprep.subr.mxu0 0.0
  %985 = vmatpush1.msra.mxu0 0.0
  %986 = vmatprep.subr.mxu0 0.0
  %987 = vmatpush1.msra.mxu0 0.0
  %988 = vmatprep.subr.mxu0 0.0
  %989 = vmatpush1.msra.mxu0 0.0
  %990 = vmatprep.subr.mxu0 0.0
  %991 = vmatpush1.msra.mxu0 0.0
  %992 = vmatprep.mubr.f32.mxu0 0.0
  %993 = vmatmul.mubr.f32.gmra.mrb[0].mxu0 %v923
  %v994 = vpop.f32.mrb[0].mxu0
  %v995 = vadd.f32 0.0, %v994
  %v996 = vpop.f32.mrb[0].mxu0
  %997 = vmatprep.mubr.f32.mxu0 0.0
  %998 = vmatmul.mubr.f32.gmra.mrb[0].mxu0 %v926
  %v999 = vpop.f32.mrb[0].mxu0
  %v1000 = vadd.f32 0.0, %v999
  %v1001 = vpop.f32.mrb[0].mxu0
  %1002 = vdwg.mxu0
  %1003 = vst.msk [vmem:[#allocation2] sm:$0xff] %vm335, %v995
  %1004 = vst.msk [vmem:[#allocation2 + $0x8] sm:$0xff] %vm335, %v1000
  %1005 = vst.msk [vmem:[#allocation4] sm:$0xff] %vm253, 0.0
  %1006 = vst.msk [vmem:[#allocation4 + $0x8] sm:$0xff] %vm253, 0.0
  loop: start=0, step=1, limit=32
  $region84: #{tpu_custom_call.1} parent=0 // loop_pre_header
    _
  $region85: #{tpu_custom_call.1} parent=0 // loop_header
    %s1008 = sphi 0, %s1012
    %p1009 = scmp.ge.s32.totalorder %s1008, 32
  $region86: #{tpu_custom_call.1} parent=0 // loop_header_branch
    %1011 = sbr.rel (%p1009) target = $region90
  $region87: #{tpu_custom_call.1} parent=0 // loop_body
    %s1013 = sld [smem:[#allocation6 + %s1008]]
    %s1014 = sld [smem:[#allocation7 + %s1008]]
    %s1015 = scalar_lea.vmem [#allocation2], %s1013
    %v1016 = vld [vmem:[%s1015] sm:$0x1]
    %s1017 = scalar_lea.vmem [#allocation3], %s1008
    %v1018 = vld [vmem:[%s1017] sm:$0x1]
    %1020 = vset.pattern.permute.xlu0 0
    %1021 = vperm.xlu0 %1020, %v1018
    %v1022 = vpop.permute.xlu0 %1021
    %v1024 = vmul.f32 %v1016, %v1022
    %1025 = vset.pattern.permute.xlu0 1
    %1026 = vperm.xlu0 %1025, %v1018
    %v1027 = vpop.permute.xlu0 %1026
    %v1029 = vmul.f32 %v1016, %v1027
    %1031 = vrot.lane.b32.xlu0 %v1029, 96
    %v1032 = vpop.permute.xlu0 %1031
    %v1034 = vadd.f32 %v1024, %v1032
    %1035 = vset.pattern.permute.xlu0 2
    %1036 = vperm.xlu0 %1035, %v1018
    %v1037 = vpop.permute.xlu0 %1036
    %v1039 = vmul.f32 %v1016, %v1037
    %1041 = vrot.lane.b32.xlu0 %v1039, 64
    %v1042 = vpop.permute.xlu0 %1041
    %v1044 = vadd.f32 %v1034, %v1042
    %s1045 = scalar_lea.vmem [#allocation4], %s1014
    %v1046 = vld [vmem:[%s1045] sm:$0x1]
    %v1047 = vadd.f32 %v1046, %v1044
    %vm1048 = vcmask 253952
    %1049 = vst.msk [vmem:[%s1045] sm:$0x1] %vm1048, %v1047
  $region88: #{tpu_custom_call.1} parent=0 // loop_footer
    %s1012 = sadd.s32 1, %s1008
  $region89: #{tpu_custom_call.1} parent=0 // loop_footer_branch
    %1007 = sbr.rel target = $region85
  $region90: #{tpu_custom_call.1} parent=0 // loop_exit
    _
  %v1050 = vld [vmem:[#allocation4] sm:$0xff]
  %v1051 = vld [vmem:[#allocation4 + $0x8] sm:$0xff]
  %v1052 = vmul.f32 %v1050, %v388
  %v1053 = vmul.f32 %v1051, %v393
  %v1054 = vsel %vm253, %v1052, 0.0
  %v1055 = vsel %vm253, %v1053, 0.0
  %v1056 = vadd.f32 %v1054, %v1055
  %v1057 = vrot.slane %v1056, 4
  %v1058 = vadd.f32 %v1056, %v1057
  %v1059 = vrot.slane %v1058, 2
  %v1060 = vadd.f32 %v1058, %v1059
  %v1061 = vrot.slane %v1060, 1
  %v1062 = vadd.f32 %v1060, %v1061
  %v1063 = vmul.f32 %v1062, %v406
  %v1064 = vmul.f32 %v1052, %v1052
  %v1065 = vmul.f32 %v1053, %v1053
  %v1066 = vsel %vm253, %v1064, 0.0
  %v1067 = vsel %vm253, %v1065, 0.0
  %v1068 = vadd.f32 %v1066, %v1067
  %v1069 = vrot.slane %v1068, 4
  %v1070 = vadd.f32 %v1068, %v1069
  %v1071 = vrot.slane %v1070, 2
  %v1072 = vadd.f32 %v1070, %v1071
  %v1073 = vrot.slane %v1072, 1
  %v1074 = vadd.f32 %v1072, %v1073
  %v1075 = vmul.f32 %v1074, %v406
  %v1076 = vmul.f32 %v1063, %v1063
  %v1077 = vsub.f32 %v1075, %v1076
  %v1078 = vsub.f32 %v1052, %v1063
  %v1079 = vsub.f32 %v1053, %v1063
  %v1080 = vadd.f32 %v1077, 1e-05
  %v1081 = vrsqrt.pop %v1080
  %v1082 = vmul.f32 %v1078, %v1081
  %v1083 = vmul.f32 %v1079, %v1081
  %s1084 = scalar_lea.vmem %s11, 2
  %v1085 = vld [vmem:[%s1084] sm:$0x1]
  %v1087 = vlaneseq
  %v1088 = vshrl.u32 %v1087, 7
  %v1089 = vsub.s32 0, %v1088
  %v1090 = vrot.slane %v1085, %v1089
  %v1092 = vmul.f32 %v1082, %v1090
  %v1093 = vmul.f32 %v1083, %v1090
  %s1094 = scalar_lea.vmem %s12, 2
  %v1095 = vld [vmem:[%s1094] sm:$0x1]
  %v1097 = vlaneseq
  %v1098 = vshrl.u32 %v1097, 7
  %v1099 = vsub.s32 0, %v1098
  %v1100 = vrot.slane %v1095, %v1099
  %v1102 = vadd.f32 %v1092, %v1100
  %v1103 = vadd.f32 %v1093, %v1100
  %v1104 = vmax.f32 %v1102, 0.0
  %v1105 = vmax.f32 %v1103, 0.0
  %v1106 = vadd.f32 %v1104, %v777
  %v1107 = vadd.f32 %v1105, %v778
  %v1108 = vld [vmem:[%s5] sm:$0x3]
  %vm1109 = vcmask 130048
  %v1111 = vsel %vm1109, %v1108, 0
  %1113 = vmatprep.subr.mxu0 0.0
  %1114 = vmatpush1.msra.mxu0 %v1106
  %1115 = vmatprep.subr.mxu0 0.0
  %1116 = vmatpush1.msra.mxu0 %v1107
  %1117 = vmatprep.subr.mxu0 0.0
  %1118 = vmatpush1.msra.mxu0 0.0
  %1119 = vmatprep.subr.mxu0 0.0
  %1120 = vmatpush1.msra.mxu0 0.0
  %1121 = vmatprep.subr.mxu0 0.0
  %1122 = vmatpush1.msra.mxu0 0.0
  %1123 = vmatprep.subr.mxu0 0.0
  %1124 = vmatpush1.msra.mxu0 0.0
  %1125 = vmatprep.subr.mxu0 0.0
  %1126 = vmatpush1.msra.mxu0 0.0
  %1127 = vmatprep.subr.mxu0 0.0
  %1128 = vmatpush1.msra.mxu0 0.0
  %1129 = vmatprep.subr.mxu0 0.0
  %1130 = vmatpush1.msra.mxu0 0.0
  %1131 = vmatprep.subr.mxu0 0.0
  %1132 = vmatpush1.msra.mxu0 0.0
  %1133 = vmatprep.subr.mxu0 0.0
  %1134 = vmatpush1.msra.mxu0 0.0
  %1135 = vmatprep.subr.mxu0 0.0
  %1136 = vmatpush1.msra.mxu0 0.0
  %1137 = vmatprep.subr.mxu0 0.0
  %1138 = vmatpush1.msra.mxu0 0.0
  %1139 = vmatprep.subr.mxu0 0.0
  %1140 = vmatpush1.msra.mxu0 0.0
  %1141 = vmatprep.subr.mxu0 0.0
  %1142 = vmatpush1.msra.mxu0 0.0
  %1143 = vmatprep.subr.mxu0 0.0
  %1144 = vmatpush1.msra.mxu0 0.0
  %1145 = vmatprep.subr.mxu0 0.0
  %1146 = vmatpush1.msra.mxu0 0.0
  %1147 = vmatprep.subr.mxu0 0.0
  %1148 = vmatpush1.msra.mxu0 0.0
  %1149 = vmatprep.subr.mxu0 0.0
  %1150 = vmatpush1.msra.mxu0 0.0
  %1151 = vmatprep.subr.mxu0 0.0
  %1152 = vmatpush1.msra.mxu0 0.0
  %1153 = vmatprep.subr.mxu0 0.0
  %1154 = vmatpush1.msra.mxu0 0.0
  %1155 = vmatprep.subr.mxu0 0.0
  %1156 = vmatpush1.msra.mxu0 0.0
  %1157 = vmatprep.subr.mxu0 0.0
  %1158 = vmatpush1.msra.mxu0 0.0
  %1159 = vmatprep.subr.mxu0 0.0
  %1160 = vmatpush1.msra.mxu0 0.0
  %1161 = vmatprep.subr.mxu0 0.0
  %1162 = vmatpush1.msra.mxu0 0.0
  %1163 = vmatprep.subr.mxu0 0.0
  %1164 = vmatpush1.msra.mxu0 0.0
  %1165 = vmatprep.subr.mxu0 0.0
  %1166 = vmatpush1.msra.mxu0 0.0
  %1167 = vmatprep.subr.mxu0 0.0
  %1168 = vmatpush1.msra.mxu0 0.0
  %1169 = vmatprep.subr.mxu0 0.0
  %1170 = vmatpush1.msra.mxu0 0.0
  %1171 = vmatprep.subr.mxu0 0.0
  %1172 = vmatpush1.msra.mxu0 0.0
  %1173 = vmatprep.subr.mxu0 0.0
  %1174 = vmatpush1.msra.mxu0 0.0
  %1175 = vmatprep.subr.mxu0 0.0
  %1176 = vmatpush1.msra.mxu0 0.0
  %1177 = vmatprep.mubr.f32.mxu0 0.0
  %1178 = vmatmul.mubr.f32.gmra.mrb[0].mxu0 %v1111
  %v1179 = vpop.f32.mrb[0].mxu0
  %v1180 = vadd.f32 0.0, %v1179
  %v1181 = vpop.f32.mrb[0].mxu0
  %1182 = vdwg.mxu0
  %v1183 = vld [vmem:[%s13] sm:$0xff]
  %v1184 = vld [vmem:[%s13 + $0x8] sm:$0xff]
  %v1185 = vld [vmem:[%s13 + $0x10] sm:$0xff]
  %v1186 = vld [vmem:[%s13 + $0x18] sm:$0xff]
  %v1187 = vld [vmem:[%s14] sm:$0x1]
  %v1189 = vlaneseq
  %v1190 = vshrl.u32 %v1189, 7
  %v1191 = vsub.s32 0, %v1190
  %v1192 = vrot.slane %v1187, %v1191
  %v1195 = vsel %vm253, %v1180, 0
  %1197 = vmatprep.subr.mxu0 0.0
  %1198 = vmatpush1.msra.mxu0 %v1183
  %1199 = vmatprep.subr.mxu0 0.0
  %1200 = vmatpush1.msra.mxu0 %v1184
  %1201 = vmatprep.subr.mxu0 0.0
  %1202 = vmatpush1.msra.mxu0 %v1185
  %1203 = vmatprep.subr.mxu0 0.0
  %1204 = vmatpush1.msra.mxu0 %v1186
  %1205 = vmatprep.subr.mxu0 0.0
  %1206 = vmatpush1.msra.mxu0 0.0
  %1207 = vmatprep.subr.mxu0 0.0
  %1208 = vmatpush1.msra.mxu0 0.0
  %1209 = vmatprep.subr.mxu0 0.0
  %1210 = vmatpush1.msra.mxu0 0.0
  %1211 = vmatprep.subr.mxu0 0.0
  %1212 = vmatpush1.msra.mxu0 0.0
  %1213 = vmatprep.subr.mxu0 0.0
  %1214 = vmatpush1.msra.mxu0 0.0
  %1215 = vmatprep.subr.mxu0 0.0
  %1216 = vmatpush1.msra.mxu0 0.0
  %1217 = vmatprep.subr.mxu0 0.0
  %1218 = vmatpush1.msra.mxu0 0.0
  %1219 = vmatprep.subr.mxu0 0.0
  %1220 = vmatpush1.msra.mxu0 0.0
  %1221 = vmatprep.subr.mxu0 0.0
  %1222 = vmatpush1.msra.mxu0 0.0
  %1223 = vmatprep.subr.mxu0 0.0
  %1224 = vmatpush1.msra.mxu0 0.0
  %1225 = vmatprep.subr.mxu0 0.0
  %1226 = vmatpush1.msra.mxu0 0.0
  %1227 = vmatprep.subr.mxu0 0.0
  %1228 = vmatpush1.msra.mxu0 0.0
  %1229 = vmatprep.subr.mxu0 0.0
  %1230 = vmatpush1.msra.mxu0 0.0
  %1231 = vmatprep.subr.mxu0 0.0
  %1232 = vmatpush1.msra.mxu0 0.0
  %1233 = vmatprep.subr.mxu0 0.0
  %1234 = vmatpush1.msra.mxu0 0.0
  %1235 = vmatprep.subr.mxu0 0.0
  %1236 = vmatpush1.msra.mxu0 0.0
  %1237 = vmatprep.subr.mxu0 0.0
  %1238 = vmatpush1.msra.mxu0 0.0
  %1239 = vmatprep.subr.mxu0 0.0
  %1240 = vmatpush1.msra.mxu0 0.0
  %1241 = vmatprep.subr.mxu0 0.0
  %1242 = vmatpush1.msra.mxu0 0.0
  %1243 = vmatprep.subr.mxu0 0.0
  %1244 = vmatpush1.msra.mxu0 0.0
  %1245 = vmatprep.subr.mxu0 0.0
  %1246 = vmatpush1.msra.mxu0 0.0
  %1247 = vmatprep.subr.mxu0 0.0
  %1248 = vmatpush1.msra.mxu0 0.0
  %1249 = vmatprep.subr.mxu0 0.0
  %1250 = vmatpush1.msra.mxu0 0.0
  %1251 = vmatprep.subr.mxu0 0.0
  %1252 = vmatpush1.msra.mxu0 0.0
  %1253 = vmatprep.subr.mxu0 0.0
  %1254 = vmatpush1.msra.mxu0 0.0
  %1255 = vmatprep.subr.mxu0 0.0
  %1256 = vmatpush1.msra.mxu0 0.0
  %1257 = vmatprep.subr.mxu0 0.0
  %1258 = vmatpush1.msra.mxu0 0.0
  %1259 = vmatprep.subr.mxu0 0.0
  %1260 = vmatpush1.msra.mxu0 0.0
  %1261 = vmatprep.mubr.f32.mxu0 0.0
  %1262 = vmatmul.mubr.f32.gmra.mrb[0].mxu0 %v1195
  %v1263 = vpop.f32.mrb[0].mxu0
  %v1264 = vadd.f32 %v1192, %v1263
  %v1265 = vpop.f32.mrb[0].mxu0
  %1266 = vdwg.mxu0
  %v1267 = vmax.f32 %v1264, 0.0
  %v1268 = vld [vmem:[%s15] sm:$0xff]
  %v1269 = vld [vmem:[%s15 + $0x8] sm:$0xff]
  %v1270 = vld [vmem:[%s16] sm:$0x1]
  %v1272 = vlaneseq
  %v1273 = vshrl.u32 %v1272, 7
  %v1274 = vsub.s32 0, %v1273
  %v1275 = vrot.slane %v1270, %v1274
  %v1278 = vsel %vm1109, %v1267, 0
  %1280 = vmatprep.subr.mxu0 0.0
  %1281 = vmatpush1.msra.mxu0 %v1268
  %1282 = vmatprep.subr.mxu0 0.0
  %1283 = vmatpush1.msra.mxu0 %v1269
  %1284 = vmatprep.subr.mxu0 0.0
  %1285 = vmatpush1.msra.mxu0 0.0
  %1286 = vmatprep.subr.mxu0 0.0
  %1287 = vmatpush1.msra.mxu0 0.0
  %1288 = vmatprep.subr.mxu0 0.0
  %1289 = vmatpush1.msra.mxu0 0.0
  %1290 = vmatprep.subr.mxu0 0.0
  %1291 = vmatpush1.msra.mxu0 0.0
  %1292 = vmatprep.subr.mxu0 0.0
  %1293 = vmatpush1.msra.mxu0 0.0
  %1294 = vmatprep.subr.mxu0 0.0
  %1295 = vmatpush1.msra.mxu0 0.0
  %1296 = vmatprep.subr.mxu0 0.0
  %1297 = vmatpush1.msra.mxu0 0.0
  %1298 = vmatprep.subr.mxu0 0.0
  %1299 = vmatpush1.msra.mxu0 0.0
  %1300 = vmatprep.subr.mxu0 0.0
  %1301 = vmatpush1.msra.mxu0 0.0
  %1302 = vmatprep.subr.mxu0 0.0
  %1303 = vmatpush1.msra.mxu0 0.0
  %1304 = vmatprep.subr.mxu0 0.0
  %1305 = vmatpush1.msra.mxu0 0.0
  %1306 = vmatprep.subr.mxu0 0.0
  %1307 = vmatpush1.msra.mxu0 0.0
  %1308 = vmatprep.subr.mxu0 0.0
  %1309 = vmatpush1.msra.mxu0 0.0
  %1310 = vmatprep.subr.mxu0 0.0
  %1311 = vmatpush1.msra.mxu0 0.0
  %1312 = vmatprep.subr.mxu0 0.0
  %1313 = vmatpush1.msra.mxu0 0.0
  %1314 = vmatprep.subr.mxu0 0.0
  %1315 = vmatpush1.msra.mxu0 0.0
  %1316 = vmatprep.subr.mxu0 0.0
  %1317 = vmatpush1.msra.mxu0 0.0
  %1318 = vmatprep.subr.mxu0 0.0
  %1319 = vmatpush1.msra.mxu0 0.0
  %1320 = vmatprep.subr.mxu0 0.0
  %1321 = vmatpush1.msra.mxu0 0.0
  %1322 = vmatprep.subr.mxu0 0.0
  %1323 = vmatpush1.msra.mxu0 0.0
  %1324 = vmatprep.subr.mxu0 0.0
  %1325 = vmatpush1.msra.mxu0 0.0
  %1326 = vmatprep.subr.mxu0 0.0
  %1327 = vmatpush1.msra.mxu0 0.0
  %1328 = vmatprep.subr.mxu0 0.0
  %1329 = vmatpush1.msra.mxu0 0.0
  %1330 = vmatprep.subr.mxu0 0.0
  %1331 = vmatpush1.msra.mxu0 0.0
  %1332 = vmatprep.subr.mxu0 0.0
  %1333 = vmatpush1.msra.mxu0 0.0
  %1334 = vmatprep.subr.mxu0 0.0
  %1335 = vmatpush1.msra.mxu0 0.0
  %1336 = vmatprep.subr.mxu0 0.0
  %1337 = vmatpush1.msra.mxu0 0.0
  %1338 = vmatprep.subr.mxu0 0.0
  %1339 = vmatpush1.msra.mxu0 0.0
  %1340 = vmatprep.subr.mxu0 0.0
  %1341 = vmatpush1.msra.mxu0 0.0
  %1342 = vmatprep.subr.mxu0 0.0
  %1343 = vmatpush1.msra.mxu0 0.0
  %1344 = vmatprep.mubr.f32.mxu0 0.0
  %1345 = vmatmul.mubr.f32.gmra.mrb[0].mxu0 %v1278
  %v1346 = vpop.f32.mrb[0].mxu0
  %v1347 = vadd.f32 %v1275, %v1346
  %v1348 = vpop.f32.mrb[0].mxu0
  %1349 = vdwg.mxu0
  %v1350 = vmax.f32 %v1347, 0.0
  %v1351 = vld [vmem:[%s17] sm:$0xff]
  %v1352 = vld [vmem:[#allocation8] sm:$0x1]
  %v1354 = vlaneseq
  %v1355 = vshrl.u32 %v1354, 7
  %v1356 = vsub.s32 0, %v1355
  %v1357 = vrot.slane %v1352, %v1356
  %vm1359 = vcmask 64512
  %v1361 = vsel %vm1359, %v1350, 0
  %1363 = vmatprep.subr.mxu0 0.0
  %1364 = vmatpush1.msra.mxu0 %v1351
  %1365 = vmatprep.subr.mxu0 0.0
  %1366 = vmatpush1.msra.mxu0 0.0
  %1367 = vmatprep.subr.mxu0 0.0
  %1368 = vmatpush1.msra.mxu0 0.0
  %1369 = vmatprep.subr.mxu0 0.0
  %1370 = vmatpush1.msra.mxu0 0.0
  %1371 = vmatprep.subr.mxu0 0.0
  %1372 = vmatpush1.msra.mxu0 0.0
  %1373 = vmatprep.subr.mxu0 0.0
  %1374 = vmatpush1.msra.mxu0 0.0
  %1375 = vmatprep.subr.mxu0 0.0
  %1376 = vmatpush1.msra.mxu0 0.0
  %1377 = vmatprep.subr.mxu0 0.0
  %1378 = vmatpush1.msra.mxu0 0.0
  %1379 = vmatprep.subr.mxu0 0.0
  %1380 = vmatpush1.msra.mxu0 0.0
  %1381 = vmatprep.subr.mxu0 0.0
  %1382 = vmatpush1.msra.mxu0 0.0
  %1383 = vmatprep.subr.mxu0 0.0
  %1384 = vmatpush1.msra.mxu0 0.0
  %1385 = vmatprep.subr.mxu0 0.0
  %1386 = vmatpush1.msra.mxu0 0.0
  %1387 = vmatprep.subr.mxu0 0.0
  %1388 = vmatpush1.msra.mxu0 0.0
  %1389 = vmatprep.subr.mxu0 0.0
  %1390 = vmatpush1.msra.mxu0 0.0
  %1391 = vmatprep.subr.mxu0 0.0
  %1392 = vmatpush1.msra.mxu0 0.0
  %1393 = vmatprep.subr.mxu0 0.0
  %1394 = vmatpush1.msra.mxu0 0.0
  %1395 = vmatprep.subr.mxu0 0.0
  %1396 = vmatpush1.msra.mxu0 0.0
  %1397 = vmatprep.subr.mxu0 0.0
  %1398 = vmatpush1.msra.mxu0 0.0
  %1399 = vmatprep.subr.mxu0 0.0
  %1400 = vmatpush1.msra.mxu0 0.0
  %1401 = vmatprep.subr.mxu0 0.0
  %1402 = vmatpush1.msra.mxu0 0.0
  %1403 = vmatprep.subr.mxu0 0.0
  %1404 = vmatpush1.msra.mxu0 0.0
  %1405 = vmatprep.subr.mxu0 0.0
  %1406 = vmatpush1.msra.mxu0 0.0
  %1407 = vmatprep.subr.mxu0 0.0
  %1408 = vmatpush1.msra.mxu0 0.0
  %1409 = vmatprep.subr.mxu0 0.0
  %1410 = vmatpush1.msra.mxu0 0.0
  %1411 = vmatprep.subr.mxu0 0.0
  %1412 = vmatpush1.msra.mxu0 0.0
  %1413 = vmatprep.subr.mxu0 0.0
  %1414 = vmatpush1.msra.mxu0 0.0
  %1415 = vmatprep.subr.mxu0 0.0
  %1416 = vmatpush1.msra.mxu0 0.0
  %1417 = vmatprep.subr.mxu0 0.0
  %1418 = vmatpush1.msra.mxu0 0.0
  %1419 = vmatprep.subr.mxu0 0.0
  %1420 = vmatpush1.msra.mxu0 0.0
  %1421 = vmatprep.subr.mxu0 0.0
  %1422 = vmatpush1.msra.mxu0 0.0
  %1423 = vmatprep.subr.mxu0 0.0
  %1424 = vmatpush1.msra.mxu0 0.0
  %1425 = vmatprep.subr.mxu0 0.0
  %1426 = vmatpush1.msra.mxu0 0.0
  %1427 = vmatprep.mubr.f32.mxu0 0.0
  %1428 = vmatmul.mubr.f32.gmra.mrb[0].mxu0 %v1361
  %v1429 = vpop.f32.mrb[0].mxu0
  %v1430 = vadd.f32 %v1357, %v1429
  %v1431 = vpop.f32.mrb[0].mxu0
  %1432 = vdwg.mxu0
  %vm1433 = vcmask 1024
  %1434 = vst.msk [vmem:[%s19] sm:$0x3] %vm1433, %v1430
  // Predicated region
  $region91: #{tpu_custom_call.1} parent=0 // pred_check
    _
  $region92: #{tpu_custom_call.1} parent=0 // pred_check_branch
    %1436 = sbr.rel (0) target = $region94
  $region93: #{tpu_custom_call.1} parent=0 // pred_region
    _
  $region94: #{tpu_custom_call.1} parent=0 // pred_fallthru
    _
  // Predicated region
  $region95: #{tpu_custom_call.1} parent=0 // pred_check
    _
  $region96: #{tpu_custom_call.1} parent=0 // pred_check_branch
    %1438 = sbr.rel (0) target = $region98
  $region97: #{tpu_custom_call.1} parent=0 // pred_region
    _
  $region98: #{tpu_custom_call.1} parent=0 // pred_fallthru
    _

</llo_original>
